<compile_context>
chip_gen: v7x
topology: tpu7x:2x2x1
jax: 0.10.0
libtpu: 0.0.40
codegen_flags: <defaults>
</compile_context>

<pallas_src>
import functools

import numpy as np
import jax
import jax.numpy as jnp
from jax.experimental import pallas as pl
from jax.experimental.pallas import tpu as pltpu


# --------------------------------- kernel ----------------------------------

def _maxpool_kernel(x_ref, o_ref, *, f, fd):
    """Max-pool one block.

    x_ref block: (TC, BD, BH, W)    BD = BOD*fd depth slices, BH = BOH*f rows.
    o_ref block: (TC, BOD, BOH, OW)
    """
    TC, BD, BH, W = x_ref.shape
    OW = W // f
    BOH = BH // f
    BOD = BD // fd

    v = x_ref[...]
    # --- W (lane-direction) pooling: fold the f-wide window into the minor dim.
    v = v.reshape(TC, BD, BH, OW, f)
    v = jnp.max(v, axis=-1)                        # (TC, BD, BH, OW)
    # --- H (sublane-direction) pooling.
    v = v.reshape(TC, BD, BOH, f, OW)
    v = jnp.max(v, axis=3)                         # (TC, BD, BOH, OW)
    # --- D pooling (3-D only; fd == 1 for 2-D, nothing to do).
    if fd > 1:
        v = v.reshape(TC, BOD, fd, BOH, OW)
        v = jnp.max(v, axis=2)                     # (TC, BOD, BOH, OW)
    o_ref[...] = v.astype(o_ref.dtype)


# ------------------------------- tile chooser -------------------------------

def _divisors_desc(n):
    return [d for d in range(n, 0, -1) if n % d == 0]


def _choose_tiles(NC, OD, OH, fd, f, W, itemsize, budget_bytes):
    """Pick (TC, BOD, TOH) so the input block fits the byte budget while the
    minor-two block dims stay (8,128)-friendly (TOH multiple of 8 or == OH)."""
    TC, BOD, TOH = NC, OD, OH

    def blk_bytes(tc, bod, toh):
        return tc * (bod * fd) * (toh * f) * W * itemsize

    if blk_bytes(TC, BOD, TOH) > budget_bytes:
        for d in _divisors_desc(NC):
            TC = d
            if blk_bytes(TC, BOD, TOH) <= budget_bytes:
                break
    if blk_bytes(TC, BOD, TOH) > budget_bytes:
        for d in _divisors_desc(OD):
            BOD = d
            if blk_bytes(TC, BOD, TOH) <= budget_bytes:
                break
    if blk_bytes(TC, BOD, TOH) > budget_bytes:
        for d in _divisors_desc(OH):
            if d != OH and d % 8 != 0:
                continue
            TOH = d
            if blk_bytes(TC, BOD, TOH) <= budget_bytes:
                break
    return TC, BOD, TOH


# ------------------------------ pallas wrapper ------------------------------

def downsample_pallas(x, downsample_factor, ndim=2):
    """Forward pass of Downsample: MaxPool{2,3}d(downsample_factor)."""
    if ndim not in (2, 3):
        raise ValueError(
            f"Invalid number of dimensions: ndim={ndim!r}. Options are 2 or 3.")
    f = int(downsample_factor)
    assert x.ndim == 2 + ndim, (x.shape, ndim)

    N, C = x.shape[0], x.shape[1]
    spatial = tuple(x.shape[2:])
    outs = tuple(s // f for s in spatial)            # floor mode (MaxPool default)
    crop = tuple(o * f for o in outs)
    if crop != spatial:                              # truncate like torch MaxPool
        x = x[(slice(None), slice(None)) + tuple(slice(0, c) for c in crop)]

    if ndim == 2:
        (H, W), (OH, OW) = crop, outs
        D, OD, fd = 1, 1, 1
    else:
        (D, H, W), (OD, OH, OW) = crop, outs
        fd = f
    NC = N * C

    # Row-major reshape only: a bitcast, no HBM round trip (unlike transpose).
    x4 = x.reshape(NC, D, H, W)

    itemsize = jnp.dtype(x.dtype).itemsize
    # ~4 MiB input block -> double-buffered in+out well under the scoped-VMEM
    # defaults (16 MiB v5e, 32 MiB v6e/v7x); tiny inputs -> one grid step.
    TC, BOD, TOH = _choose_tiles(NC, OD, OH, fd, f, W, itemsize,
                                 budget_bytes=4 * 1024 * 1024)
    BD, BH = BOD * fd, TOH * f
    grid = (NC // TC, OD // BOD, OH // TOH)

    out = pl.pallas_call(
        functools.partial(_maxpool_kernel, f=f, fd=fd),
        out_shape=jax.ShapeDtypeStruct((NC, OD, OH, OW), x.dtype),
        grid_spec=pltpu.PrefetchScalarGridSpec(
            num_scalar_prefetch=0,
            grid=grid,
            in_specs=[pl.BlockSpec((TC, BD, BH, W),
                                   lambda c, d, h: (c, d, h, 0))],
            out_specs=pl.BlockSpec((TC, BOD, TOH, OW),
                                   lambda c, d, h: (c, d, h, 0)),
        ),
        compiler_params=pltpu.CompilerParams(
            # Every output block is written exactly once -> all axes independent.
            # On v7x both TensorCores stay fed even when N (or NC) is 1 or odd.
            dimension_semantics=("parallel", "parallel", "parallel"),
            vmem_limit_bytes=32 * 1024 * 1024,
        ),
    )(x4)

    if ndim == 2:
        return out.reshape(N, C, OH, OW)
    return out.reshape(N, C, OD, OH, OW)


# ---------------------------- pure-JAX reference ----------------------------

def downsample_reference(x, f, ndim=2):
    spatial = x.shape[2:]
    outs = tuple(s // f for s in spatial)
    x = x[(slice(None), slice(None)) + tuple(slice(0, o * f) for o in outs)]
    shape = x.shape[:2] + sum(((o, f) for o in outs), ())
    xr = x.reshape(shape)
    return xr.max(axis=tuple(3 + 2 * i for i in range(ndim)))


# ----------------------------------- main -----------------------------------

if __name__ == "__main__":
    key = jax.random.PRNGKey(0)
    k2, k3, k4 = jax.random.split(key, 3)

    # Downsample(downsample_factor=2, ndim=2) on (N, C, H, W) = (2, 4, 16, 16)
    x2 = jax.random.normal(k2, (2, 4, 16, 16), jnp.float32)
    y2 = downsample_pallas(x2, 2, ndim=2)
    jax.block_until_ready(y2)
    np.testing.assert_allclose(np.asarray(y2),
                               np.asarray(downsample_reference(x2, 2, ndim=2)),
                               rtol=0, atol=0)

    # Downsample(downsample_factor=2, ndim=3) on (N, C, D, H, W) = (2, 4, 8, 8, 8)
    x3 = jax.random.normal(k3, (2, 4, 8, 8, 8), jnp.float32)
    y3 = downsample_pallas(x3, 2, ndim=3)
    jax.block_until_ready(y3)
    np.testing.assert_allclose(np.asarray(y3),
                               np.asarray(downsample_reference(x3, 2, ndim=3)),
                               rtol=0, atol=0)

    # Floor-mode (non-divisible spatial) check: (2, 4, 17, 18) -> (2, 4, 8, 9)
    xf = jax.random.normal(k4, (2, 4, 17, 18), jnp.float32)
    yf = downsample_pallas(xf, 2, ndim=2)
    jax.block_until_ready(yf)
    np.testing.assert_allclose(np.asarray(yf),
                               np.asarray(downsample_reference(xf, 2, ndim=2)),
                               rtol=0, atol=0)

    print("KERNEL_OK")
</pallas_src>

<mosaic_0001>
module attributes {stable_mosaic.version = 11 : i64} {
  func.func @_maxpool_kernel(%arg0: i32, %arg1: i32, %arg2: i32, %arg3: memref<8x1x16x16xf32, #tpu.memory_space<vmem>>, %arg4: memref<8x1x8x8xf32, #tpu.memory_space<vmem>>) attributes {dimension_semantics = [#tpu.dimension_semantics<parallel>, #tpu.dimension_semantics<parallel>, #tpu.dimension_semantics<parallel>], iteration_bounds = array<i64: 1, 1, 1>, scalar_prefetch = 0 : i64, scratch_operands = 0 : i64, tpu.core_type = #tpu.core_type<tc>, window_params = [{transform_indices = @transform_0, window_bounds = array<i64: 8, 1, 16, 16>}, {transform_indices = @transform_1, window_bounds = array<i64: 8, 1, 8, 8>}]} {
    %c0 = arith.constant 0 : index
    %c0_0 = arith.constant 0 : index
    %c0_1 = arith.constant 0 : index
    %c0_2 = arith.constant 0 : index
    %0 = vector.load %arg3[%c0, %c0_0, %c0_1, %c0_2] : memref<8x1x16x16xf32, #tpu.memory_space<vmem>>, vector<8x1x16x16xf32>
    %1 = vector.shape_cast %0 : vector<8x1x16x16xf32> to vector<8x1x16x8x2xf32>
    %cst = arith.constant dense<0xFF800000> : vector<8x1x16x8xf32>
    %2 = vector.multi_reduction <maximumf>, %1, %cst [4] : vector<8x1x16x8x2xf32> to vector<8x1x16x8xf32>
    %3 = vector.shape_cast %2 : vector<8x1x16x8xf32> to vector<8x1x8x2x8xf32>
    %cst_3 = arith.constant dense<0xFF800000> : vector<8x1x8x8xf32>
    %4 = vector.multi_reduction <maximumf>, %3, %cst_3 [3] : vector<8x1x8x2x8xf32> to vector<8x1x8x8xf32>
    %c0_4 = arith.constant 0 : index
    %c0_5 = arith.constant 0 : index
    %c0_6 = arith.constant 0 : index
    %c0_7 = arith.constant 0 : index
    %5 = vector.load %arg4[%c0_4, %c0_5, %c0_6, %c0_7] : memref<8x1x8x8xf32, #tpu.memory_space<vmem>>, vector<8x1x8x8xf32>
    tpu.vector_store %arg4[%c0_4, %c0_5, %c0_6, %c0_7], %4 {strides = array<i32>} : memref<8x1x8x8xf32, #tpu.memory_space<vmem>>, vector<8x1x8x8xf32>,
    return
  }
  func.func @transform_0(%arg0: i32, %arg1: i32, %arg2: i32) -> (i32, i32, i32, i32) {
    %c0_i32 = arith.constant 0 : i32
    %c0_i32_0 = arith.constant 0 : i32
    return %arg0, %arg1, %arg2, %c0_i32 : i32, i32, i32, i32
  }
  func.func @transform_1(%arg0: i32, %arg1: i32, %arg2: i32) -> (i32, i32, i32, i32) {
    %c0_i32 = arith.constant 0 : i32
    %c0_i32_0 = arith.constant 0 : i32
    return %arg0, %arg1, %arg2, %c0_i32 : i32, i32, i32, i32
  }
}

</mosaic_0001>

<llo_original>
// kernel: tpu_custom_call.1
$region0: #{tpu_custom_call.1}
  #allocation0 [shape = 'u32[]', space=smem, size = 0x4, offset = 0x4, fixed_abs, tag = 'smem constant byte address 0x4 - core index']
  #allocation1 [shape = 'u32[144,128]{1,0:T(1,128)}', space=vmem, size = 0x12000, scoped, tag = 'internal scratch']
  %s0 = inlined_call_operand.hbm [shape: f32[8,1,16,16], index: 0, kind: input, shape index: {}]
  %s1 = inlined_call_operand.hbm [shape: f32[8,1,8,8], index: 1, kind: output, shape index: {}]
  %s2 = sld [smem:[#allocation0]]
  $region18: #{tpu_custom_call.1} parent=0
    _
  %s4 = ssub.s32 1, %s2
  %s5 = scalar_select 0, %s4, %s2
  $region1: #{tpu_custom_call.1} parent=0
    #allocation2 [shape = 'u8[65536]{0}', space=vmem, size = 0x10000, scoped, tag = 'input window, operand 0, single buffered']
    #allocation3 [shape = 's32[1]{0}', space=sflag, size = 0x4, scoped, tag = 'scoped memory for tpu_custom_call.1']
    #allocation4 [shape = 's32[1]{0}', space=sflag, size = 0x4, scoped, tag = 'scoped memory for tpu_custom_call.1']
    #allocation5 [shape = 'u8[32768]{0}', space=vmem, size = 0x8000, scoped, tag = 'output window, operand 0, single buffered']
    %6 = vsyncpa [#allocation3], 0
    %7 = vsyncpa [#allocation4], 0
    // Predicated region
    $region2: #{tpu_custom_call.1} parent=1 // pred_check
      _
    $region3: #{tpu_custom_call.1} parent=1 // pred_check_branch
      %9 = sbr.rel (0) target = $region5
    $region4: #{tpu_custom_call.1} parent=1 // pred_region
      %s11 = ssub.s32 2048, 2048
      %12 = vsyncadd [#allocation3], %s11
      %s13 = sshll.u32 [#allocation2], 4
      %s14 = int_to_ptr.vmem [resolvable:$true] %s13
      %19 = dma.hbm_to_vmem [thread:$0]  %s0, 2048, %s14, [#allocation3], 128, 128, 8
    $region5: #{tpu_custom_call.1} parent=1 // pred_fallthru
      _
    // Predicated region
    $region6: #{tpu_custom_call.1} parent=1 // pred_check
      _
    $region7: #{tpu_custom_call.1} parent=1 // pred_check_branch
      %21 = sbr.rel (0) target = $region9
    $region8: #{tpu_custom_call.1} parent=1 // pred_region
      %22 = dma.done [#allocation3], 2048
    $region9: #{tpu_custom_call.1} parent=1 // pred_fallthru
      _
    %v23 = vld [vmem:[#allocation2] sm:$0xff]
    %v24 = vld [vmem:[#allocation2 + $0x8] sm:$0xff]
    %v25 = vld [vmem:[#allocation2 + $0x10] sm:$0xff]
    %v26 = vld [vmem:[#allocation2 + $0x18] sm:$0xff]
    %v27 = vld [vmem:[#allocation2 + $0x20] sm:$0xff]
    %v28 = vld [vmem:[#allocation2 + $0x28] sm:$0xff]
    %v29 = vld [vmem:[#allocation2 + $0x30] sm:$0xff]
    %v30 = vld [vmem:[#allocation2 + $0x38] sm:$0xff]
    %v31 = vld [vmem:[#allocation2 + $0x40] sm:$0xff]
    %v32 = vld [vmem:[#allocation2 + $0x48] sm:$0xff]
    %v33 = vld [vmem:[#allocation2 + $0x50] sm:$0xff]
    %v34 = vld [vmem:[#allocation2 + $0x58] sm:$0xff]
    %v35 = vld [vmem:[#allocation2 + $0x60] sm:$0xff]
    %v36 = vld [vmem:[#allocation2 + $0x68] sm:$0xff]
    %v37 = vld [vmem:[#allocation2 + $0x70] sm:$0xff]
    %v38 = vld [vmem:[#allocation2 + $0x78] sm:$0xff]
    %55 = vrot.lane.b32.xlu0 %v23, 126
    %v56 = vpop.permute.xlu0 %55
    %57 = vrot.lane.b32.xlu0 %v24, 126
    %v58 = vpop.permute.xlu0 %57
    %59 = vrot.lane.b32.xlu0 %v25, 126
    %v60 = vpop.permute.xlu0 %59
    %61 = vrot.lane.b32.xlu0 %v26, 126
    %v62 = vpop.permute.xlu0 %61
    %63 = vrot.lane.b32.xlu0 %v27, 126
    %v64 = vpop.permute.xlu0 %63
    %65 = vrot.lane.b32.xlu0 %v28, 126
    %v66 = vpop.permute.xlu0 %65
    %67 = vrot.lane.b32.xlu0 %v29, 126
    %v68 = vpop.permute.xlu0 %67
    %69 = vrot.lane.b32.xlu0 %v30, 126
    %v70 = vpop.permute.xlu0 %69
    %71 = vrot.lane.b32.xlu0 %v31, 126
    %v72 = vpop.permute.xlu0 %71
    %73 = vrot.lane.b32.xlu0 %v32, 126
    %v74 = vpop.permute.xlu0 %73
    %75 = vrot.lane.b32.xlu0 %v33, 126
    %v76 = vpop.permute.xlu0 %75
    %77 = vrot.lane.b32.xlu0 %v34, 126
    %v78 = vpop.permute.xlu0 %77
    %79 = vrot.lane.b32.xlu0 %v35, 126
    %v80 = vpop.permute.xlu0 %79
    %81 = vrot.lane.b32.xlu0 %v36, 126
    %v82 = vpop.permute.xlu0 %81
    %83 = vrot.lane.b32.xlu0 %v37, 126
    %v84 = vpop.permute.xlu0 %83
    %85 = vrot.lane.b32.xlu0 %v38, 126
    %v86 = vpop.permute.xlu0 %85
    %103 = vrot.lane.b32.xlu0 %v23, 124
    %v104 = vpop.permute.xlu0 %103
    %105 = vrot.lane.b32.xlu0 %v24, 124
    %v106 = vpop.permute.xlu0 %105
    %107 = vrot.lane.b32.xlu0 %v25, 124
    %v108 = vpop.permute.xlu0 %107
    %109 = vrot.lane.b32.xlu0 %v26, 124
    %v110 = vpop.permute.xlu0 %109
    %111 = vrot.lane.b32.xlu0 %v27, 124
    %v112 = vpop.permute.xlu0 %111
    %113 = vrot.lane.b32.xlu0 %v28, 124
    %v114 = vpop.permute.xlu0 %113
    %115 = vrot.lane.b32.xlu0 %v29, 124
    %v116 = vpop.permute.xlu0 %115
    %117 = vrot.lane.b32.xlu0 %v30, 124
    %v118 = vpop.permute.xlu0 %117
    %119 = vrot.lane.b32.xlu0 %v31, 124
    %v120 = vpop.permute.xlu0 %119
    %121 = vrot.lane.b32.xlu0 %v32, 124
    %v122 = vpop.permute.xlu0 %121
    %123 = vrot.lane.b32.xlu0 %v33, 124
    %v124 = vpop.permute.xlu0 %123
    %125 = vrot.lane.b32.xlu0 %v34, 124
    %v126 = vpop.permute.xlu0 %125
    %127 = vrot.lane.b32.xlu0 %v35, 124
    %v128 = vpop.permute.xlu0 %127
    %129 = vrot.lane.b32.xlu0 %v36, 124
    %v130 = vpop.permute.xlu0 %129
    %131 = vrot.lane.b32.xlu0 %v37, 124
    %v132 = vpop.permute.xlu0 %131
    %133 = vrot.lane.b32.xlu0 %v38, 124
    %v134 = vpop.permute.xlu0 %133
    %151 = vrot.lane.b32.xlu0 %v23, 122
    %v152 = vpop.permute.xlu0 %151
    %153 = vrot.lane.b32.xlu0 %v24, 122
    %v154 = vpop.permute.xlu0 %153
    %155 = vrot.lane.b32.xlu0 %v25, 122
    %v156 = vpop.permute.xlu0 %155
    %157 = vrot.lane.b32.xlu0 %v26, 122
    %v158 = vpop.permute.xlu0 %157
    %159 = vrot.lane.b32.xlu0 %v27, 122
    %v160 = vpop.permute.xlu0 %159
    %161 = vrot.lane.b32.xlu0 %v28, 122
    %v162 = vpop.permute.xlu0 %161
    %163 = vrot.lane.b32.xlu0 %v29, 122
    %v164 = vpop.permute.xlu0 %163
    %165 = vrot.lane.b32.xlu0 %v30, 122
    %v166 = vpop.permute.xlu0 %165
    %167 = vrot.lane.b32.xlu0 %v31, 122
    %v168 = vpop.permute.xlu0 %167
    %169 = vrot.lane.b32.xlu0 %v32, 122
    %v170 = vpop.permute.xlu0 %169
    %171 = vrot.lane.b32.xlu0 %v33, 122
    %v172 = vpop.permute.xlu0 %171
    %173 = vrot.lane.b32.xlu0 %v34, 122
    %v174 = vpop.permute.xlu0 %173
    %175 = vrot.lane.b32.xlu0 %v35, 122
    %v176 = vpop.permute.xlu0 %175
    %177 = vrot.lane.b32.xlu0 %v36, 122
    %v178 = vpop.permute.xlu0 %177
    %179 = vrot.lane.b32.xlu0 %v37, 122
    %v180 = vpop.permute.xlu0 %179
    %181 = vrot.lane.b32.xlu0 %v38, 122
    %v182 = vpop.permute.xlu0 %181
    %199 = vrot.lane.b32.xlu0 %v23, 120
    %v200 = vpop.permute.xlu0 %199
    %201 = vrot.lane.b32.xlu0 %v24, 120
    %v202 = vpop.permute.xlu0 %201
    %203 = vrot.lane.b32.xlu0 %v25, 120
    %v204 = vpop.permute.xlu0 %203
    %205 = vrot.lane.b32.xlu0 %v26, 120
    %v206 = vpop.permute.xlu0 %205
    %207 = vrot.lane.b32.xlu0 %v27, 120
    %v208 = vpop.permute.xlu0 %207
    %209 = vrot.lane.b32.xlu0 %v28, 120
    %v210 = vpop.permute.xlu0 %209
    %211 = vrot.lane.b32.xlu0 %v29, 120
    %v212 = vpop.permute.xlu0 %211
    %213 = vrot.lane.b32.xlu0 %v30, 120
    %v214 = vpop.permute.xlu0 %213
    %215 = vrot.lane.b32.xlu0 %v31, 120
    %v216 = vpop.permute.xlu0 %215
    %217 = vrot.lane.b32.xlu0 %v32, 120
    %v218 = vpop.permute.xlu0 %217
    %219 = vrot.lane.b32.xlu0 %v33, 120
    %v220 = vpop.permute.xlu0 %219
    %221 = vrot.lane.b32.xlu0 %v34, 120
    %v222 = vpop.permute.xlu0 %221
    %223 = vrot.lane.b32.xlu0 %v35, 120
    %v224 = vpop.permute.xlu0 %223
    %225 = vrot.lane.b32.xlu0 %v36, 120
    %v226 = vpop.permute.xlu0 %225
    %227 = vrot.lane.b32.xlu0 %v37, 120
    %v228 = vpop.permute.xlu0 %227
    %229 = vrot.lane.b32.xlu0 %v38, 120
    %v230 = vpop.permute.xlu0 %229
    %247 = vrot.lane.b32.xlu0 %v23, 118
    %v248 = vpop.permute.xlu0 %247
    %249 = vrot.lane.b32.xlu0 %v24, 118
    %v250 = vpop.permute.xlu0 %249
    %251 = vrot.lane.b32.xlu0 %v25, 118
    %v252 = vpop.permute.xlu0 %251
    %253 = vrot.lane.b32.xlu0 %v26, 118
    %v254 = vpop.permute.xlu0 %253
    %255 = vrot.lane.b32.xlu0 %v27, 118
    %v256 = vpop.permute.xlu0 %255
    %257 = vrot.lane.b32.xlu0 %v28, 118
    %v258 = vpop.permute.xlu0 %257
    %259 = vrot.lane.b32.xlu0 %v29, 118
    %v260 = vpop.permute.xlu0 %259
    %261 = vrot.lane.b32.xlu0 %v30, 118
    %v262 = vpop.permute.xlu0 %261
    %263 = vrot.lane.b32.xlu0 %v31, 118
    %v264 = vpop.permute.xlu0 %263
    %265 = vrot.lane.b32.xlu0 %v32, 118
    %v266 = vpop.permute.xlu0 %265
    %267 = vrot.lane.b32.xlu0 %v33, 118
    %v268 = vpop.permute.xlu0 %267
    %269 = vrot.lane.b32.xlu0 %v34, 118
    %v270 = vpop.permute.xlu0 %269
    %271 = vrot.lane.b32.xlu0 %v35, 118
    %v272 = vpop.permute.xlu0 %271
    %273 = vrot.lane.b32.xlu0 %v36, 118
    %v274 = vpop.permute.xlu0 %273
    %275 = vrot.lane.b32.xlu0 %v37, 118
    %v276 = vpop.permute.xlu0 %275
    %277 = vrot.lane.b32.xlu0 %v38, 118
    %v278 = vpop.permute.xlu0 %277
    %295 = vrot.lane.b32.xlu0 %v23, 116
    %v296 = vpop.permute.xlu0 %295
    %297 = vrot.lane.b32.xlu0 %v24, 116
    %v298 = vpop.permute.xlu0 %297
    %299 = vrot.lane.b32.xlu0 %v25, 116
    %v300 = vpop.permute.xlu0 %299
    %301 = vrot.lane.b32.xlu0 %v26, 116
    %v302 = vpop.permute.xlu0 %301
    %303 = vrot.lane.b32.xlu0 %v27, 116
    %v304 = vpop.permute.xlu0 %303
    %305 = vrot.lane.b32.xlu0 %v28, 116
    %v306 = vpop.permute.xlu0 %305
    %307 = vrot.lane.b32.xlu0 %v29, 116
    %v308 = vpop.permute.xlu0 %307
    %309 = vrot.lane.b32.xlu0 %v30, 116
    %v310 = vpop.permute.xlu0 %309
    %311 = vrot.lane.b32.xlu0 %v31, 116
    %v312 = vpop.permute.xlu0 %311
    %313 = vrot.lane.b32.xlu0 %v32, 116
    %v314 = vpop.permute.xlu0 %313
    %315 = vrot.lane.b32.xlu0 %v33, 116
    %v316 = vpop.permute.xlu0 %315
    %317 = vrot.lane.b32.xlu0 %v34, 116
    %v318 = vpop.permute.xlu0 %317
    %319 = vrot.lane.b32.xlu0 %v35, 116
    %v320 = vpop.permute.xlu0 %319
    %321 = vrot.lane.b32.xlu0 %v36, 116
    %v322 = vpop.permute.xlu0 %321
    %323 = vrot.lane.b32.xlu0 %v37, 116
    %v324 = vpop.permute.xlu0 %323
    %325 = vrot.lane.b32.xlu0 %v38, 116
    %v326 = vpop.permute.xlu0 %325
    %343 = vrot.lane.b32.xlu0 %v23, 114
    %v344 = vpop.permute.xlu0 %343
    %345 = vrot.lane.b32.xlu0 %v24, 114
    %v346 = vpop.permute.xlu0 %345
    %347 = vrot.lane.b32.xlu0 %v25, 114
    %v348 = vpop.permute.xlu0 %347
    %349 = vrot.lane.b32.xlu0 %v26, 114
    %v350 = vpop.permute.xlu0 %349
    %351 = vrot.lane.b32.xlu0 %v27, 114
    %v352 = vpop.permute.xlu0 %351
    %353 = vrot.lane.b32.xlu0 %v28, 114
    %v354 = vpop.permute.xlu0 %353
    %355 = vrot.lane.b32.xlu0 %v29, 114
    %v356 = vpop.permute.xlu0 %355
    %357 = vrot.lane.b32.xlu0 %v30, 114
    %v358 = vpop.permute.xlu0 %357
    %359 = vrot.lane.b32.xlu0 %v31, 114
    %v360 = vpop.permute.xlu0 %359
    %361 = vrot.lane.b32.xlu0 %v32, 114
    %v362 = vpop.permute.xlu0 %361
    %363 = vrot.lane.b32.xlu0 %v33, 114
    %v364 = vpop.permute.xlu0 %363
    %365 = vrot.lane.b32.xlu0 %v34, 114
    %v366 = vpop.permute.xlu0 %365
    %367 = vrot.lane.b32.xlu0 %v35, 114
    %v368 = vpop.permute.xlu0 %367
    %369 = vrot.lane.b32.xlu0 %v36, 114
    %v370 = vpop.permute.xlu0 %369
    %371 = vrot.lane.b32.xlu0 %v37, 114
    %v372 = vpop.permute.xlu0 %371
    %373 = vrot.lane.b32.xlu0 %v38, 114
    %v374 = vpop.permute.xlu0 %373
    %v391 = vcombine.low %v23, %v104
    %v392 = vcombine.high %v23, %v104
    %v394 = vunpack.c.l.s4 1983009808
    %v395 = vunpack.c.0.s8 %v394
    %v396 = vlaneseq
    %v397 = vshrl.u32 %v396, 7
    %v398 = vsub.s32 %v395, %v397
    %v399 = vrot.slane %v391, %v398
    %v401 = vunpack.c.l.s4 1983009808
    %v402 = vunpack.c.0.s8 %v401
    %v403 = vlaneseq
    %v404 = vshrl.u32 %v403, 7
    %v405 = vsub.s32 %v402, %v404
    %v406 = vrot.slane %v392, %v405
    %v407 = vcombine.low %v56, %v152
    %v408 = vcombine.high %v56, %v152
    %v410 = vunpack.c.l.s4 1983009808
    %v411 = vunpack.c.0.s8 %v410
    %v412 = vlaneseq
    %v413 = vshrl.u32 %v412, 7
    %v414 = vsub.s32 %v411, %v413
    %v415 = vrot.slane %v407, %v414
    %v417 = vunpack.c.l.s4 1983009808
    %v418 = vunpack.c.0.s8 %v417
    %v419 = vlaneseq
    %v420 = vshrl.u32 %v419, 7
    %v421 = vsub.s32 %v418, %v420
    %v422 = vrot.slane %v408, %v421
    %v423 = vcombine.low %v200, %v296
    %v424 = vcombine.high %v200, %v296
    %v426 = vunpack.c.l.s4 1983009808
    %v427 = vunpack.c.0.s8 %v426
    %v428 = vlaneseq
    %v429 = vshrl.u32 %v428, 7
    %v430 = vsub.s32 %v427, %v429
    %v431 = vrot.slane %v423, %v430
    %v433 = vunpack.c.l.s4 1983009808
    %v434 = vunpack.c.0.s8 %v433
    %v435 = vlaneseq
    %v436 = vshrl.u32 %v435, 7
    %v437 = vsub.s32 %v434, %v436
    %v438 = vrot.slane %v424, %v437
    %v439 = vcombine.low %v248, %v344
    %v440 = vcombine.high %v248, %v344
    %v442 = vunpack.c.l.s4 1983009808
    %v443 = vunpack.c.0.s8 %v442
    %v444 = vlaneseq
    %v445 = vshrl.u32 %v444, 7
    %v446 = vsub.s32 %v443, %v445
    %v447 = vrot.slane %v439, %v446
    %v449 = vunpack.c.l.s4 1983009808
    %v450 = vunpack.c.0.s8 %v449
    %v451 = vlaneseq
    %v452 = vshrl.u32 %v451, 7
    %v453 = vsub.s32 %v450, %v452
    %v454 = vrot.slane %v440, %v453
    %v455 = vcombine.low %v399, %v415
    %v456 = vcombine.high %v399, %v415
    %v458 = vunpack.c.l.s4 1934713408
    %v459 = vunpack.c.0.s8 %v458
    %v460 = vlaneseq
    %v461 = vshrl.u32 %v460, 7
    %v462 = vsub.s32 %v459, %v461
    %v463 = vrot.slane %v455, %v462
    %v465 = vunpack.c.l.s4 1934713408
    %v466 = vunpack.c.0.s8 %v465
    %v467 = vlaneseq
    %v468 = vshrl.u32 %v467, 7
    %v469 = vsub.s32 %v466, %v468
    %v470 = vrot.slane %v456, %v469
    %v471 = vcombine.low %v406, %v422
    %v472 = vcombine.high %v406, %v422
    %v474 = vunpack.c.l.s4 1934713408
    %v475 = vunpack.c.0.s8 %v474
    %v476 = vlaneseq
    %v477 = vshrl.u32 %v476, 7
    %v478 = vsub.s32 %v475, %v477
    %v479 = vrot.slane %v471, %v478
    %v481 = vunpack.c.l.s4 1934713408
    %v482 = vunpack.c.0.s8 %v481
    %v483 = vlaneseq
    %v484 = vshrl.u32 %v483, 7
    %v485 = vsub.s32 %v482, %v484
    %v486 = vrot.slane %v472, %v485
    %v487 = vcombine.low %v431, %v447
    %v488 = vcombine.high %v431, %v447
    %v490 = vunpack.c.l.s4 1934713408
    %v491 = vunpack.c.0.s8 %v490
    %v492 = vlaneseq
    %v493 = vshrl.u32 %v492, 7
    %v494 = vsub.s32 %v491, %v493
    %v495 = vrot.slane %v487, %v494
    %v497 = vunpack.c.l.s4 1934713408
    %v498 = vunpack.c.0.s8 %v497
    %v499 = vlaneseq
    %v500 = vshrl.u32 %v499, 7
    %v501 = vsub.s32 %v498, %v500
    %v502 = vrot.slane %v488, %v501
    %v503 = vcombine.low %v438, %v454
    %v504 = vcombine.high %v438, %v454
    %v506 = vunpack.c.l.s4 1934713408
    %v507 = vunpack.c.0.s8 %v506
    %v508 = vlaneseq
    %v509 = vshrl.u32 %v508, 7
    %v510 = vsub.s32 %v507, %v509
    %v511 = vrot.slane %v503, %v510
    %v513 = vunpack.c.l.s4 1934713408
    %v514 = vunpack.c.0.s8 %v513
    %v515 = vlaneseq
    %v516 = vshrl.u32 %v515, 7
    %v517 = vsub.s32 %v514, %v516
    %v518 = vrot.slane %v504, %v517
    %v519 = vcombine.low %v463, %v495
    %v520 = vcombine.high %v463, %v495
    %v521 = vcombine.low %v470, %v502
    %v522 = vcombine.high %v470, %v502
    %v523 = vcombine.low %v479, %v511
    %v524 = vcombine.high %v479, %v511
    %v525 = vcombine.low %v486, %v518
    %v526 = vcombine.high %v486, %v518
    %v527 = vcombine.low %v24, %v106
    %v528 = vcombine.high %v24, %v106
    %v530 = vunpack.c.l.s4 1983009808
    %v531 = vunpack.c.0.s8 %v530
    %v532 = vlaneseq
    %v533 = vshrl.u32 %v532, 7
    %v534 = vsub.s32 %v531, %v533
    %v535 = vrot.slane %v527, %v534
    %v537 = vunpack.c.l.s4 1983009808
    %v538 = vunpack.c.0.s8 %v537
    %v539 = vlaneseq
    %v540 = vshrl.u32 %v539, 7
    %v541 = vsub.s32 %v538, %v540
    %v542 = vrot.slane %v528, %v541
    %v543 = vcombine.low %v58, %v154
    %v544 = vcombine.high %v58, %v154
    %v546 = vunpack.c.l.s4 1983009808
    %v547 = vunpack.c.0.s8 %v546
    %v548 = vlaneseq
    %v549 = vshrl.u32 %v548, 7
    %v550 = vsub.s32 %v547, %v549
    %v551 = vrot.slane %v543, %v550
    %v553 = vunpack.c.l.s4 1983009808
    %v554 = vunpack.c.0.s8 %v553
    %v555 = vlaneseq
    %v556 = vshrl.u32 %v555, 7
    %v557 = vsub.s32 %v554, %v556
    %v558 = vrot.slane %v544, %v557
    %v559 = vcombine.low %v202, %v298
    %v560 = vcombine.high %v202, %v298
    %v562 = vunpack.c.l.s4 1983009808
    %v563 = vunpack.c.0.s8 %v562
    %v564 = vlaneseq
    %v565 = vshrl.u32 %v564, 7
    %v566 = vsub.s32 %v563, %v565
    %v567 = vrot.slane %v559, %v566
    %v569 = vunpack.c.l.s4 1983009808
    %v570 = vunpack.c.0.s8 %v569
    %v571 = vlaneseq
    %v572 = vshrl.u32 %v571, 7
    %v573 = vsub.s32 %v570, %v572
    %v574 = vrot.slane %v560, %v573
    %v575 = vcombine.low %v250, %v346
    %v576 = vcombine.high %v250, %v346
    %v578 = vunpack.c.l.s4 1983009808
    %v579 = vunpack.c.0.s8 %v578
    %v580 = vlaneseq
    %v581 = vshrl.u32 %v580, 7
    %v582 = vsub.s32 %v579, %v581
    %v583 = vrot.slane %v575, %v582
    %v585 = vunpack.c.l.s4 1983009808
    %v586 = vunpack.c.0.s8 %v585
    %v587 = vlaneseq
    %v588 = vshrl.u32 %v587, 7
    %v589 = vsub.s32 %v586, %v588
    %v590 = vrot.slane %v576, %v589
    %v591 = vcombine.low %v535, %v551
    %v592 = vcombine.high %v535, %v551
    %v594 = vunpack.c.l.s4 1934713408
    %v595 = vunpack.c.0.s8 %v594
    %v596 = vlaneseq
    %v597 = vshrl.u32 %v596, 7
    %v598 = vsub.s32 %v595, %v597
    %v599 = vrot.slane %v591, %v598
    %v601 = vunpack.c.l.s4 1934713408
    %v602 = vunpack.c.0.s8 %v601
    %v603 = vlaneseq
    %v604 = vshrl.u32 %v603, 7
    %v605 = vsub.s32 %v602, %v604
    %v606 = vrot.slane %v592, %v605
    %v607 = vcombine.low %v542, %v558
    %v608 = vcombine.high %v542, %v558
    %v610 = vunpack.c.l.s4 1934713408
    %v611 = vunpack.c.0.s8 %v610
    %v612 = vlaneseq
    %v613 = vshrl.u32 %v612, 7
    %v614 = vsub.s32 %v611, %v613
    %v615 = vrot.slane %v607, %v614
    %v617 = vunpack.c.l.s4 1934713408
    %v618 = vunpack.c.0.s8 %v617
    %v619 = vlaneseq
    %v620 = vshrl.u32 %v619, 7
    %v621 = vsub.s32 %v618, %v620
    %v622 = vrot.slane %v608, %v621
    %v623 = vcombine.low %v567, %v583
    %v624 = vcombine.high %v567, %v583
    %v626 = vunpack.c.l.s4 1934713408
    %v627 = vunpack.c.0.s8 %v626
    %v628 = vlaneseq
    %v629 = vshrl.u32 %v628, 7
    %v630 = vsub.s32 %v627, %v629
    %v631 = vrot.slane %v623, %v630
    %v633 = vunpack.c.l.s4 1934713408
    %v634 = vunpack.c.0.s8 %v633
    %v635 = vlaneseq
    %v636 = vshrl.u32 %v635, 7
    %v637 = vsub.s32 %v634, %v636
    %v638 = vrot.slane %v624, %v637
    %v639 = vcombine.low %v574, %v590
    %v640 = vcombine.high %v574, %v590
    %v642 = vunpack.c.l.s4 1934713408
    %v643 = vunpack.c.0.s8 %v642
    %v644 = vlaneseq
    %v645 = vshrl.u32 %v644, 7
    %v646 = vsub.s32 %v643, %v645
    %v647 = vrot.slane %v639, %v646
    %v649 = vunpack.c.l.s4 1934713408
    %v650 = vunpack.c.0.s8 %v649
    %v651 = vlaneseq
    %v652 = vshrl.u32 %v651, 7
    %v653 = vsub.s32 %v650, %v652
    %v654 = vrot.slane %v640, %v653
    %v655 = vcombine.low %v599, %v631
    %v656 = vcombine.high %v599, %v631
    %v657 = vcombine.low %v606, %v638
    %v658 = vcombine.high %v606, %v638
    %v659 = vcombine.low %v615, %v647
    %v660 = vcombine.high %v615, %v647
    %v661 = vcombine.low %v622, %v654
    %v662 = vcombine.high %v622, %v654
    %v663 = vcombine.low %v25, %v108
    %v664 = vcombine.high %v25, %v108
    %v666 = vunpack.c.l.s4 1983009808
    %v667 = vunpack.c.0.s8 %v666
    %v668 = vlaneseq
    %v669 = vshrl.u32 %v668, 7
    %v670 = vsub.s32 %v667, %v669
    %v671 = vrot.slane %v663, %v670
    %v673 = vunpack.c.l.s4 1983009808
    %v674 = vunpack.c.0.s8 %v673
    %v675 = vlaneseq
    %v676 = vshrl.u32 %v675, 7
    %v677 = vsub.s32 %v674, %v676
    %v678 = vrot.slane %v664, %v677
    %v679 = vcombine.low %v60, %v156
    %v680 = vcombine.high %v60, %v156
    %v682 = vunpack.c.l.s4 1983009808
    %v683 = vunpack.c.0.s8 %v682
    %v684 = vlaneseq
    %v685 = vshrl.u32 %v684, 7
    %v686 = vsub.s32 %v683, %v685
    %v687 = vrot.slane %v679, %v686
    %v689 = vunpack.c.l.s4 1983009808
    %v690 = vunpack.c.0.s8 %v689
    %v691 = vlaneseq
    %v692 = vshrl.u32 %v691, 7
    %v693 = vsub.s32 %v690, %v692
    %v694 = vrot.slane %v680, %v693
    %v695 = vcombine.low %v204, %v300
    %v696 = vcombine.high %v204, %v300
    %v698 = vunpack.c.l.s4 1983009808
    %v699 = vunpack.c.0.s8 %v698
    %v700 = vlaneseq
    %v701 = vshrl.u32 %v700, 7
    %v702 = vsub.s32 %v699, %v701
    %v703 = vrot.slane %v695, %v702
    %v705 = vunpack.c.l.s4 1983009808
    %v706 = vunpack.c.0.s8 %v705
    %v707 = vlaneseq
    %v708 = vshrl.u32 %v707, 7
    %v709 = vsub.s32 %v706, %v708
    %v710 = vrot.slane %v696, %v709
    %v711 = vcombine.low %v252, %v348
    %v712 = vcombine.high %v252, %v348
    %v714 = vunpack.c.l.s4 1983009808
    %v715 = vunpack.c.0.s8 %v714
    %v716 = vlaneseq
    %v717 = vshrl.u32 %v716, 7
    %v718 = vsub.s32 %v715, %v717
    %v719 = vrot.slane %v711, %v718
    %v721 = vunpack.c.l.s4 1983009808
    %v722 = vunpack.c.0.s8 %v721
    %v723 = vlaneseq
    %v724 = vshrl.u32 %v723, 7
    %v725 = vsub.s32 %v722, %v724
    %v726 = vrot.slane %v712, %v725
    %v727 = vcombine.low %v671, %v687
    %v728 = vcombine.high %v671, %v687
    %v730 = vunpack.c.l.s4 1934713408
    %v731 = vunpack.c.0.s8 %v730
    %v732 = vlaneseq
    %v733 = vshrl.u32 %v732, 7
    %v734 = vsub.s32 %v731, %v733
    %v735 = vrot.slane %v727, %v734
    %v737 = vunpack.c.l.s4 1934713408
    %v738 = vunpack.c.0.s8 %v737
    %v739 = vlaneseq
    %v740 = vshrl.u32 %v739, 7
    %v741 = vsub.s32 %v738, %v740
    %v742 = vrot.slane %v728, %v741
    %v743 = vcombine.low %v678, %v694
    %v744 = vcombine.high %v678, %v694
    %v746 = vunpack.c.l.s4 1934713408
    %v747 = vunpack.c.0.s8 %v746
    %v748 = vlaneseq
    %v749 = vshrl.u32 %v748, 7
    %v750 = vsub.s32 %v747, %v749
    %v751 = vrot.slane %v743, %v750
    %v753 = vunpack.c.l.s4 1934713408
    %v754 = vunpack.c.0.s8 %v753
    %v755 = vlaneseq
    %v756 = vshrl.u32 %v755, 7
    %v757 = vsub.s32 %v754, %v756
    %v758 = vrot.slane %v744, %v757
    %v759 = vcombine.low %v703, %v719
    %v760 = vcombine.high %v703, %v719
    %v762 = vunpack.c.l.s4 1934713408
    %v763 = vunpack.c.0.s8 %v762
    %v764 = vlaneseq
    %v765 = vshrl.u32 %v764, 7
    %v766 = vsub.s32 %v763, %v765
    %v767 = vrot.slane %v759, %v766
    %v769 = vunpack.c.l.s4 1934713408
    %v770 = vunpack.c.0.s8 %v769
    %v771 = vlaneseq
    %v772 = vshrl.u32 %v771, 7
    %v773 = vsub.s32 %v770, %v772
    %v774 = vrot.slane %v760, %v773
    %v775 = vcombine.low %v710, %v726
    %v776 = vcombine.high %v710, %v726
    %v778 = vunpack.c.l.s4 1934713408
    %v779 = vunpack.c.0.s8 %v778
    %v780 = vlaneseq
    %v781 = vshrl.u32 %v780, 7
    %v782 = vsub.s32 %v779, %v781
    %v783 = vrot.slane %v775, %v782
    %v785 = vunpack.c.l.s4 1934713408
    %v786 = vunpack.c.0.s8 %v785
    %v787 = vlaneseq
    %v788 = vshrl.u32 %v787, 7
    %v789 = vsub.s32 %v786, %v788
    %v790 = vrot.slane %v776, %v789
    %v791 = vcombine.low %v735, %v767
    %v792 = vcombine.high %v735, %v767
    %v793 = vcombine.low %v742, %v774
    %v794 = vcombine.high %v742, %v774
    %v795 = vcombine.low %v751, %v783
    %v796 = vcombine.high %v751, %v783
    %v797 = vcombine.low %v758, %v790
    %v798 = vcombine.high %v758, %v790
    %v799 = vcombine.low %v26, %v110
    %v800 = vcombine.high %v26, %v110
    %v802 = vunpack.c.l.s4 1983009808
    %v803 = vunpack.c.0.s8 %v802
    %v804 = vlaneseq
    %v805 = vshrl.u32 %v804, 7
    %v806 = vsub.s32 %v803, %v805
    %v807 = vrot.slane %v799, %v806
    %v809 = vunpack.c.l.s4 1983009808
    %v810 = vunpack.c.0.s8 %v809
    %v811 = vlaneseq
    %v812 = vshrl.u32 %v811, 7
    %v813 = vsub.s32 %v810, %v812
    %v814 = vrot.slane %v800, %v813
    %v815 = vcombine.low %v62, %v158
    %v816 = vcombine.high %v62, %v158
    %v818 = vunpack.c.l.s4 1983009808
    %v819 = vunpack.c.0.s8 %v818
    %v820 = vlaneseq
    %v821 = vshrl.u32 %v820, 7
    %v822 = vsub.s32 %v819, %v821
    %v823 = vrot.slane %v815, %v822
    %v825 = vunpack.c.l.s4 1983009808
    %v826 = vunpack.c.0.s8 %v825
    %v827 = vlaneseq
    %v828 = vshrl.u32 %v827, 7
    %v829 = vsub.s32 %v826, %v828
    %v830 = vrot.slane %v816, %v829
    %v831 = vcombine.low %v206, %v302
    %v832 = vcombine.high %v206, %v302
    %v834 = vunpack.c.l.s4 1983009808
    %v835 = vunpack.c.0.s8 %v834
    %v836 = vlaneseq
    %v837 = vshrl.u32 %v836, 7
    %v838 = vsub.s32 %v835, %v837
    %v839 = vrot.slane %v831, %v838
    %v841 = vunpack.c.l.s4 1983009808
    %v842 = vunpack.c.0.s8 %v841
    %v843 = vlaneseq
    %v844 = vshrl.u32 %v843, 7
    %v845 = vsub.s32 %v842, %v844
    %v846 = vrot.slane %v832, %v845
    %v847 = vcombine.low %v254, %v350
    %v848 = vcombine.high %v254, %v350
    %v850 = vunpack.c.l.s4 1983009808
    %v851 = vunpack.c.0.s8 %v850
    %v852 = vlaneseq
    %v853 = vshrl.u32 %v852, 7
    %v854 = vsub.s32 %v851, %v853
    %v855 = vrot.slane %v847, %v854
    %v857 = vunpack.c.l.s4 1983009808
    %v858 = vunpack.c.0.s8 %v857
    %v859 = vlaneseq
    %v860 = vshrl.u32 %v859, 7
    %v861 = vsub.s32 %v858, %v860
    %v862 = vrot.slane %v848, %v861
    %v863 = vcombine.low %v807, %v823
    %v864 = vcombine.high %v807, %v823
    %v866 = vunpack.c.l.s4 1934713408
    %v867 = vunpack.c.0.s8 %v866
    %v868 = vlaneseq
    %v869 = vshrl.u32 %v868, 7
    %v870 = vsub.s32 %v867, %v869
    %v871 = vrot.slane %v863, %v870
    %v873 = vunpack.c.l.s4 1934713408
    %v874 = vunpack.c.0.s8 %v873
    %v875 = vlaneseq
    %v876 = vshrl.u32 %v875, 7
    %v877 = vsub.s32 %v874, %v876
    %v878 = vrot.slane %v864, %v877
    %v879 = vcombine.low %v814, %v830
    %v880 = vcombine.high %v814, %v830
    %v882 = vunpack.c.l.s4 1934713408
    %v883 = vunpack.c.0.s8 %v882
    %v884 = vlaneseq
    %v885 = vshrl.u32 %v884, 7
    %v886 = vsub.s32 %v883, %v885
    %v887 = vrot.slane %v879, %v886
    %v889 = vunpack.c.l.s4 1934713408
    %v890 = vunpack.c.0.s8 %v889
    %v891 = vlaneseq
    %v892 = vshrl.u32 %v891, 7
    %v893 = vsub.s32 %v890, %v892
    %v894 = vrot.slane %v880, %v893
    %v895 = vcombine.low %v839, %v855
    %v896 = vcombine.high %v839, %v855
    %v898 = vunpack.c.l.s4 1934713408
    %v899 = vunpack.c.0.s8 %v898
    %v900 = vlaneseq
    %v901 = vshrl.u32 %v900, 7
    %v902 = vsub.s32 %v899, %v901
    %v903 = vrot.slane %v895, %v902
    %v905 = vunpack.c.l.s4 1934713408
    %v906 = vunpack.c.0.s8 %v905
    %v907 = vlaneseq
    %v908 = vshrl.u32 %v907, 7
    %v909 = vsub.s32 %v906, %v908
    %v910 = vrot.slane %v896, %v909
    %v911 = vcombine.low %v846, %v862
    %v912 = vcombine.high %v846, %v862
    %v914 = vunpack.c.l.s4 1934713408
    %v915 = vunpack.c.0.s8 %v914
    %v916 = vlaneseq
    %v917 = vshrl.u32 %v916, 7
    %v918 = vsub.s32 %v915, %v917
    %v919 = vrot.slane %v911, %v918
    %v921 = vunpack.c.l.s4 1934713408
    %v922 = vunpack.c.0.s8 %v921
    %v923 = vlaneseq
    %v924 = vshrl.u32 %v923, 7
    %v925 = vsub.s32 %v922, %v924
    %v926 = vrot.slane %v912, %v925
    %v927 = vcombine.low %v871, %v903
    %v928 = vcombine.high %v871, %v903
    %v929 = vcombine.low %v878, %v910
    %v930 = vcombine.high %v878, %v910
    %v931 = vcombine.low %v887, %v919
    %v932 = vcombine.high %v887, %v919
    %v933 = vcombine.low %v894, %v926
    %v934 = vcombine.high %v894, %v926
    %v935 = vcombine.low %v27, %v112
    %v936 = vcombine.high %v27, %v112
    %v938 = vunpack.c.l.s4 1983009808
    %v939 = vunpack.c.0.s8 %v938
    %v940 = vlaneseq
    %v941 = vshrl.u32 %v940, 7
    %v942 = vsub.s32 %v939, %v941
    %v943 = vrot.slane %v935, %v942
    %v945 = vunpack.c.l.s4 1983009808
    %v946 = vunpack.c.0.s8 %v945
    %v947 = vlaneseq
    %v948 = vshrl.u32 %v947, 7
    %v949 = vsub.s32 %v946, %v948
    %v950 = vrot.slane %v936, %v949
    %v951 = vcombine.low %v64, %v160
    %v952 = vcombine.high %v64, %v160
    %v954 = vunpack.c.l.s4 1983009808
    %v955 = vunpack.c.0.s8 %v954
    %v956 = vlaneseq
    %v957 = vshrl.u32 %v956, 7
    %v958 = vsub.s32 %v955, %v957
    %v959 = vrot.slane %v951, %v958
    %v961 = vunpack.c.l.s4 1983009808
    %v962 = vunpack.c.0.s8 %v961
    %v963 = vlaneseq
    %v964 = vshrl.u32 %v963, 7
    %v965 = vsub.s32 %v962, %v964
    %v966 = vrot.slane %v952, %v965
    %v967 = vcombine.low %v208, %v304
    %v968 = vcombine.high %v208, %v304
    %v970 = vunpack.c.l.s4 1983009808
    %v971 = vunpack.c.0.s8 %v970
    %v972 = vlaneseq
    %v973 = vshrl.u32 %v972, 7
    %v974 = vsub.s32 %v971, %v973
    %v975 = vrot.slane %v967, %v974
    %v977 = vunpack.c.l.s4 1983009808
    %v978 = vunpack.c.0.s8 %v977
    %v979 = vlaneseq
    %v980 = vshrl.u32 %v979, 7
    %v981 = vsub.s32 %v978, %v980
    %v982 = vrot.slane %v968, %v981
    %v983 = vcombine.low %v256, %v352
    %v984 = vcombine.high %v256, %v352
    %v986 = vunpack.c.l.s4 1983009808
    %v987 = vunpack.c.0.s8 %v986
    %v988 = vlaneseq
    %v989 = vshrl.u32 %v988, 7
    %v990 = vsub.s32 %v987, %v989
    %v991 = vrot.slane %v983, %v990
    %v993 = vunpack.c.l.s4 1983009808
    %v994 = vunpack.c.0.s8 %v993
    %v995 = vlaneseq
    %v996 = vshrl.u32 %v995, 7
    %v997 = vsub.s32 %v994, %v996
    %v998 = vrot.slane %v984, %v997
    %v999 = vcombine.low %v943, %v959
    %v1000 = vcombine.high %v943, %v959
    %v1002 = vunpack.c.l.s4 1934713408
    %v1003 = vunpack.c.0.s8 %v1002
    %v1004 = vlaneseq
    %v1005 = vshrl.u32 %v1004, 7
    %v1006 = vsub.s32 %v1003, %v1005
    %v1007 = vrot.slane %v999, %v1006
    %v1009 = vunpack.c.l.s4 1934713408
    %v1010 = vunpack.c.0.s8 %v1009
    %v1011 = vlaneseq
    %v1012 = vshrl.u32 %v1011, 7
    %v1013 = vsub.s32 %v1010, %v1012
    %v1014 = vrot.slane %v1000, %v1013
    %v1015 = vcombine.low %v950, %v966
    %v1016 = vcombine.high %v950, %v966
    %v1018 = vunpack.c.l.s4 1934713408
    %v1019 = vunpack.c.0.s8 %v1018
    %v1020 = vlaneseq
    %v1021 = vshrl.u32 %v1020, 7
    %v1022 = vsub.s32 %v1019, %v1021
    %v1023 = vrot.slane %v1015, %v1022
    %v1025 = vunpack.c.l.s4 1934713408
    %v1026 = vunpack.c.0.s8 %v1025
    %v1027 = vlaneseq
    %v1028 = vshrl.u32 %v1027, 7
    %v1029 = vsub.s32 %v1026, %v1028
    %v1030 = vrot.slane %v1016, %v1029
    %v1031 = vcombine.low %v975, %v991
    %v1032 = vcombine.high %v975, %v991
    %v1034 = vunpack.c.l.s4 1934713408
    %v1035 = vunpack.c.0.s8 %v1034
    %v1036 = vlaneseq
    %v1037 = vshrl.u32 %v1036, 7
    %v1038 = vsub.s32 %v1035, %v1037
    %v1039 = vrot.slane %v1031, %v1038
    %v1041 = vunpack.c.l.s4 1934713408
    %v1042 = vunpack.c.0.s8 %v1041
    %v1043 = vlaneseq
    %v1044 = vshrl.u32 %v1043, 7
    %v1045 = vsub.s32 %v1042, %v1044
    %v1046 = vrot.slane %v1032, %v1045
    %v1047 = vcombine.low %v982, %v998
    %v1048 = vcombine.high %v982, %v998
    %v1050 = vunpack.c.l.s4 1934713408
    %v1051 = vunpack.c.0.s8 %v1050
    %v1052 = vlaneseq
    %v1053 = vshrl.u32 %v1052, 7
    %v1054 = vsub.s32 %v1051, %v1053
    %v1055 = vrot.slane %v1047, %v1054
    %v1057 = vunpack.c.l.s4 1934713408
    %v1058 = vunpack.c.0.s8 %v1057
    %v1059 = vlaneseq
    %v1060 = vshrl.u32 %v1059, 7
    %v1061 = vsub.s32 %v1058, %v1060
    %v1062 = vrot.slane %v1048, %v1061
    %v1063 = vcombine.low %v1007, %v1039
    %v1064 = vcombine.high %v1007, %v1039
    %v1065 = vcombine.low %v1014, %v1046
    %v1066 = vcombine.high %v1014, %v1046
    %v1067 = vcombine.low %v1023, %v1055
    %v1068 = vcombine.high %v1023, %v1055
    %v1069 = vcombine.low %v1030, %v1062
    %v1070 = vcombine.high %v1030, %v1062
    %v1071 = vcombine.low %v28, %v114
    %v1072 = vcombine.high %v28, %v114
    %v1074 = vunpack.c.l.s4 1983009808
    %v1075 = vunpack.c.0.s8 %v1074
    %v1076 = vlaneseq
    %v1077 = vshrl.u32 %v1076, 7
    %v1078 = vsub.s32 %v1075, %v1077
    %v1079 = vrot.slane %v1071, %v1078
    %v1081 = vunpack.c.l.s4 1983009808
    %v1082 = vunpack.c.0.s8 %v1081
    %v1083 = vlaneseq
    %v1084 = vshrl.u32 %v1083, 7
    %v1085 = vsub.s32 %v1082, %v1084
    %v1086 = vrot.slane %v1072, %v1085
    %v1087 = vcombine.low %v66, %v162
    %v1088 = vcombine.high %v66, %v162
    %v1090 = vunpack.c.l.s4 1983009808
    %v1091 = vunpack.c.0.s8 %v1090
    %v1092 = vlaneseq
    %v1093 = vshrl.u32 %v1092, 7
    %v1094 = vsub.s32 %v1091, %v1093
    %v1095 = vrot.slane %v1087, %v1094
    %v1097 = vunpack.c.l.s4 1983009808
    %v1098 = vunpack.c.0.s8 %v1097
    %v1099 = vlaneseq
    %v1100 = vshrl.u32 %v1099, 7
    %v1101 = vsub.s32 %v1098, %v1100
    %v1102 = vrot.slane %v1088, %v1101
    %v1103 = vcombine.low %v210, %v306
    %v1104 = vcombine.high %v210, %v306
    %v1106 = vunpack.c.l.s4 1983009808
    %v1107 = vunpack.c.0.s8 %v1106
    %v1108 = vlaneseq
    %v1109 = vshrl.u32 %v1108, 7
    %v1110 = vsub.s32 %v1107, %v1109
    %v1111 = vrot.slane %v1103, %v1110
    %v1113 = vunpack.c.l.s4 1983009808
    %v1114 = vunpack.c.0.s8 %v1113
    %v1115 = vlaneseq
    %v1116 = vshrl.u32 %v1115, 7
    %v1117 = vsub.s32 %v1114, %v1116
    %v1118 = vrot.slane %v1104, %v1117
    %v1119 = vcombine.low %v258, %v354
    %v1120 = vcombine.high %v258, %v354
    %v1122 = vunpack.c.l.s4 1983009808
    %v1123 = vunpack.c.0.s8 %v1122
    %v1124 = vlaneseq
    %v1125 = vshrl.u32 %v1124, 7
    %v1126 = vsub.s32 %v1123, %v1125
    %v1127 = vrot.slane %v1119, %v1126
    %v1129 = vunpack.c.l.s4 1983009808
    %v1130 = vunpack.c.0.s8 %v1129
    %v1131 = vlaneseq
    %v1132 = vshrl.u32 %v1131, 7
    %v1133 = vsub.s32 %v1130, %v1132
    %v1134 = vrot.slane %v1120, %v1133
    %v1135 = vcombine.low %v1079, %v1095
    %v1136 = vcombine.high %v1079, %v1095
    %v1138 = vunpack.c.l.s4 1934713408
    %v1139 = vunpack.c.0.s8 %v1138
    %v1140 = vlaneseq
    %v1141 = vshrl.u32 %v1140, 7
    %v1142 = vsub.s32 %v1139, %v1141
    %v1143 = vrot.slane %v1135, %v1142
    %v1145 = vunpack.c.l.s4 1934713408
    %v1146 = vunpack.c.0.s8 %v1145
    %v1147 = vlaneseq
    %v1148 = vshrl.u32 %v1147, 7
    %v1149 = vsub.s32 %v1146, %v1148
    %v1150 = vrot.slane %v1136, %v1149
    %v1151 = vcombine.low %v1086, %v1102
    %v1152 = vcombine.high %v1086, %v1102
    %v1154 = vunpack.c.l.s4 1934713408
    %v1155 = vunpack.c.0.s8 %v1154
    %v1156 = vlaneseq
    %v1157 = vshrl.u32 %v1156, 7
    %v1158 = vsub.s32 %v1155, %v1157
    %v1159 = vrot.slane %v1151, %v1158
    %v1161 = vunpack.c.l.s4 1934713408
    %v1162 = vunpack.c.0.s8 %v1161
    %v1163 = vlaneseq
    %v1164 = vshrl.u32 %v1163, 7
    %v1165 = vsub.s32 %v1162, %v1164
    %v1166 = vrot.slane %v1152, %v1165
    %v1167 = vcombine.low %v1111, %v1127
    %v1168 = vcombine.high %v1111, %v1127
    %v1170 = vunpack.c.l.s4 1934713408
    %v1171 = vunpack.c.0.s8 %v1170
    %v1172 = vlaneseq
    %v1173 = vshrl.u32 %v1172, 7
    %v1174 = vsub.s32 %v1171, %v1173
    %v1175 = vrot.slane %v1167, %v1174
    %v1177 = vunpack.c.l.s4 1934713408
    %v1178 = vunpack.c.0.s8 %v1177
    %v1179 = vlaneseq
    %v1180 = vshrl.u32 %v1179, 7
    %v1181 = vsub.s32 %v1178, %v1180
    %v1182 = vrot.slane %v1168, %v1181
    %v1183 = vcombine.low %v1118, %v1134
    %v1184 = vcombine.high %v1118, %v1134
    %v1186 = vunpack.c.l.s4 1934713408
    %v1187 = vunpack.c.0.s8 %v1186
    %v1188 = vlaneseq
    %v1189 = vshrl.u32 %v1188, 7
    %v1190 = vsub.s32 %v1187, %v1189
    %v1191 = vrot.slane %v1183, %v1190
    %v1193 = vunpack.c.l.s4 1934713408
    %v1194 = vunpack.c.0.s8 %v1193
    %v1195 = vlaneseq
    %v1196 = vshrl.u32 %v1195, 7
    %v1197 = vsub.s32 %v1194, %v1196
    %v1198 = vrot.slane %v1184, %v1197
    %v1199 = vcombine.low %v1143, %v1175
    %v1200 = vcombine.high %v1143, %v1175
    %v1201 = vcombine.low %v1150, %v1182
    %v1202 = vcombine.high %v1150, %v1182
    %v1203 = vcombine.low %v1159, %v1191
    %v1204 = vcombine.high %v1159, %v1191
    %v1205 = vcombine.low %v1166, %v1198
    %v1206 = vcombine.high %v1166, %v1198
    %v1207 = vcombine.low %v29, %v116
    %v1208 = vcombine.high %v29, %v116
    %v1210 = vunpack.c.l.s4 1983009808
    %v1211 = vunpack.c.0.s8 %v1210
    %v1212 = vlaneseq
    %v1213 = vshrl.u32 %v1212, 7
    %v1214 = vsub.s32 %v1211, %v1213
    %v1215 = vrot.slane %v1207, %v1214
    %v1217 = vunpack.c.l.s4 1983009808
    %v1218 = vunpack.c.0.s8 %v1217
    %v1219 = vlaneseq
    %v1220 = vshrl.u32 %v1219, 7
    %v1221 = vsub.s32 %v1218, %v1220
    %v1222 = vrot.slane %v1208, %v1221
    %v1223 = vcombine.low %v68, %v164
    %v1224 = vcombine.high %v68, %v164
    %v1226 = vunpack.c.l.s4 1983009808
    %v1227 = vunpack.c.0.s8 %v1226
    %v1228 = vlaneseq
    %v1229 = vshrl.u32 %v1228, 7
    %v1230 = vsub.s32 %v1227, %v1229
    %v1231 = vrot.slane %v1223, %v1230
    %v1233 = vunpack.c.l.s4 1983009808
    %v1234 = vunpack.c.0.s8 %v1233
    %v1235 = vlaneseq
    %v1236 = vshrl.u32 %v1235, 7
    %v1237 = vsub.s32 %v1234, %v1236
    %v1238 = vrot.slane %v1224, %v1237
    %v1239 = vcombine.low %v212, %v308
    %v1240 = vcombine.high %v212, %v308
    %v1242 = vunpack.c.l.s4 1983009808
    %v1243 = vunpack.c.0.s8 %v1242
    %v1244 = vlaneseq
    %v1245 = vshrl.u32 %v1244, 7
    %v1246 = vsub.s32 %v1243, %v1245
    %v1247 = vrot.slane %v1239, %v1246
    %v1249 = vunpack.c.l.s4 1983009808
    %v1250 = vunpack.c.0.s8 %v1249
    %v1251 = vlaneseq
    %v1252 = vshrl.u32 %v1251, 7
    %v1253 = vsub.s32 %v1250, %v1252
    %v1254 = vrot.slane %v1240, %v1253
    %v1255 = vcombine.low %v260, %v356
    %v1256 = vcombine.high %v260, %v356
    %v1258 = vunpack.c.l.s4 1983009808
    %v1259 = vunpack.c.0.s8 %v1258
    %v1260 = vlaneseq
    %v1261 = vshrl.u32 %v1260, 7
    %v1262 = vsub.s32 %v1259, %v1261
    %v1263 = vrot.slane %v1255, %v1262
    %v1265 = vunpack.c.l.s4 1983009808
    %v1266 = vunpack.c.0.s8 %v1265
    %v1267 = vlaneseq
    %v1268 = vshrl.u32 %v1267, 7
    %v1269 = vsub.s32 %v1266, %v1268
    %v1270 = vrot.slane %v1256, %v1269
    %v1271 = vcombine.low %v1215, %v1231
    %v1272 = vcombine.high %v1215, %v1231
    %v1274 = vunpack.c.l.s4 1934713408
    %v1275 = vunpack.c.0.s8 %v1274
    %v1276 = vlaneseq
    %v1277 = vshrl.u32 %v1276, 7
    %v1278 = vsub.s32 %v1275, %v1277
    %v1279 = vrot.slane %v1271, %v1278
    %v1281 = vunpack.c.l.s4 1934713408
    %v1282 = vunpack.c.0.s8 %v1281
    %v1283 = vlaneseq
    %v1284 = vshrl.u32 %v1283, 7
    %v1285 = vsub.s32 %v1282, %v1284
    %v1286 = vrot.slane %v1272, %v1285
    %v1287 = vcombine.low %v1222, %v1238
    %v1288 = vcombine.high %v1222, %v1238
    %v1290 = vunpack.c.l.s4 1934713408
    %v1291 = vunpack.c.0.s8 %v1290
    %v1292 = vlaneseq
    %v1293 = vshrl.u32 %v1292, 7
    %v1294 = vsub.s32 %v1291, %v1293
    %v1295 = vrot.slane %v1287, %v1294
    %v1297 = vunpack.c.l.s4 1934713408
    %v1298 = vunpack.c.0.s8 %v1297
    %v1299 = vlaneseq
    %v1300 = vshrl.u32 %v1299, 7
    %v1301 = vsub.s32 %v1298, %v1300
    %v1302 = vrot.slane %v1288, %v1301
    %v1303 = vcombine.low %v1247, %v1263
    %v1304 = vcombine.high %v1247, %v1263
    %v1306 = vunpack.c.l.s4 1934713408
    %v1307 = vunpack.c.0.s8 %v1306
    %v1308 = vlaneseq
    %v1309 = vshrl.u32 %v1308, 7
    %v1310 = vsub.s32 %v1307, %v1309
    %v1311 = vrot.slane %v1303, %v1310
    %v1313 = vunpack.c.l.s4 1934713408
    %v1314 = vunpack.c.0.s8 %v1313
    %v1315 = vlaneseq
    %v1316 = vshrl.u32 %v1315, 7
    %v1317 = vsub.s32 %v1314, %v1316
    %v1318 = vrot.slane %v1304, %v1317
    %v1319 = vcombine.low %v1254, %v1270
    %v1320 = vcombine.high %v1254, %v1270
    %v1322 = vunpack.c.l.s4 1934713408
    %v1323 = vunpack.c.0.s8 %v1322
    %v1324 = vlaneseq
    %v1325 = vshrl.u32 %v1324, 7
    %v1326 = vsub.s32 %v1323, %v1325
    %v1327 = vrot.slane %v1319, %v1326
    %v1329 = vunpack.c.l.s4 1934713408
    %v1330 = vunpack.c.0.s8 %v1329
    %v1331 = vlaneseq
    %v1332 = vshrl.u32 %v1331, 7
    %v1333 = vsub.s32 %v1330, %v1332
    %v1334 = vrot.slane %v1320, %v1333
    %v1335 = vcombine.low %v1279, %v1311
    %v1336 = vcombine.high %v1279, %v1311
    %v1337 = vcombine.low %v1286, %v1318
    %v1338 = vcombine.high %v1286, %v1318
    %v1339 = vcombine.low %v1295, %v1327
    %v1340 = vcombine.high %v1295, %v1327
    %v1341 = vcombine.low %v1302, %v1334
    %v1342 = vcombine.high %v1302, %v1334
    %v1343 = vcombine.low %v30, %v118
    %v1344 = vcombine.high %v30, %v118
    %v1346 = vunpack.c.l.s4 1983009808
    %v1347 = vunpack.c.0.s8 %v1346
    %v1348 = vlaneseq
    %v1349 = vshrl.u32 %v1348, 7
    %v1350 = vsub.s32 %v1347, %v1349
    %v1351 = vrot.slane %v1343, %v1350
    %v1353 = vunpack.c.l.s4 1983009808
    %v1354 = vunpack.c.0.s8 %v1353
    %v1355 = vlaneseq
    %v1356 = vshrl.u32 %v1355, 7
    %v1357 = vsub.s32 %v1354, %v1356
    %v1358 = vrot.slane %v1344, %v1357
    %v1359 = vcombine.low %v70, %v166
    %v1360 = vcombine.high %v70, %v166
    %v1362 = vunpack.c.l.s4 1983009808
    %v1363 = vunpack.c.0.s8 %v1362
    %v1364 = vlaneseq
    %v1365 = vshrl.u32 %v1364, 7
    %v1366 = vsub.s32 %v1363, %v1365
    %v1367 = vrot.slane %v1359, %v1366
    %v1369 = vunpack.c.l.s4 1983009808
    %v1370 = vunpack.c.0.s8 %v1369
    %v1371 = vlaneseq
    %v1372 = vshrl.u32 %v1371, 7
    %v1373 = vsub.s32 %v1370, %v1372
    %v1374 = vrot.slane %v1360, %v1373
    %v1375 = vcombine.low %v214, %v310
    %v1376 = vcombine.high %v214, %v310
    %v1378 = vunpack.c.l.s4 1983009808
    %v1379 = vunpack.c.0.s8 %v1378
    %v1380 = vlaneseq
    %v1381 = vshrl.u32 %v1380, 7
    %v1382 = vsub.s32 %v1379, %v1381
    %v1383 = vrot.slane %v1375, %v1382
    %v1385 = vunpack.c.l.s4 1983009808
    %v1386 = vunpack.c.0.s8 %v1385
    %v1387 = vlaneseq
    %v1388 = vshrl.u32 %v1387, 7
    %v1389 = vsub.s32 %v1386, %v1388
    %v1390 = vrot.slane %v1376, %v1389
    %v1391 = vcombine.low %v262, %v358
    %v1392 = vcombine.high %v262, %v358
    %v1394 = vunpack.c.l.s4 1983009808
    %v1395 = vunpack.c.0.s8 %v1394
    %v1396 = vlaneseq
    %v1397 = vshrl.u32 %v1396, 7
    %v1398 = vsub.s32 %v1395, %v1397
    %v1399 = vrot.slane %v1391, %v1398
    %v1401 = vunpack.c.l.s4 1983009808
    %v1402 = vunpack.c.0.s8 %v1401
    %v1403 = vlaneseq
    %v1404 = vshrl.u32 %v1403, 7
    %v1405 = vsub.s32 %v1402, %v1404
    %v1406 = vrot.slane %v1392, %v1405
    %v1407 = vcombine.low %v1351, %v1367
    %v1408 = vcombine.high %v1351, %v1367
    %v1410 = vunpack.c.l.s4 1934713408
    %v1411 = vunpack.c.0.s8 %v1410
    %v1412 = vlaneseq
    %v1413 = vshrl.u32 %v1412, 7
    %v1414 = vsub.s32 %v1411, %v1413
    %v1415 = vrot.slane %v1407, %v1414
    %v1417 = vunpack.c.l.s4 1934713408
    %v1418 = vunpack.c.0.s8 %v1417
    %v1419 = vlaneseq
    %v1420 = vshrl.u32 %v1419, 7
    %v1421 = vsub.s32 %v1418, %v1420
    %v1422 = vrot.slane %v1408, %v1421
    %v1423 = vcombine.low %v1358, %v1374
    %v1424 = vcombine.high %v1358, %v1374
    %v1426 = vunpack.c.l.s4 1934713408
    %v1427 = vunpack.c.0.s8 %v1426
    %v1428 = vlaneseq
    %v1429 = vshrl.u32 %v1428, 7
    %v1430 = vsub.s32 %v1427, %v1429
    %v1431 = vrot.slane %v1423, %v1430
    %v1433 = vunpack.c.l.s4 1934713408
    %v1434 = vunpack.c.0.s8 %v1433
    %v1435 = vlaneseq
    %v1436 = vshrl.u32 %v1435, 7
    %v1437 = vsub.s32 %v1434, %v1436
    %v1438 = vrot.slane %v1424, %v1437
    %v1439 = vcombine.low %v1383, %v1399
    %v1440 = vcombine.high %v1383, %v1399
    %v1442 = vunpack.c.l.s4 1934713408
    %v1443 = vunpack.c.0.s8 %v1442
    %v1444 = vlaneseq
    %v1445 = vshrl.u32 %v1444, 7
    %v1446 = vsub.s32 %v1443, %v1445
    %v1447 = vrot.slane %v1439, %v1446
    %v1449 = vunpack.c.l.s4 1934713408
    %v1450 = vunpack.c.0.s8 %v1449
    %v1451 = vlaneseq
    %v1452 = vshrl.u32 %v1451, 7
    %v1453 = vsub.s32 %v1450, %v1452
    %v1454 = vrot.slane %v1440, %v1453
    %v1455 = vcombine.low %v1390, %v1406
    %v1456 = vcombine.high %v1390, %v1406
    %v1458 = vunpack.c.l.s4 1934713408
    %v1459 = vunpack.c.0.s8 %v1458
    %v1460 = vlaneseq
    %v1461 = vshrl.u32 %v1460, 7
    %v1462 = vsub.s32 %v1459, %v1461
    %v1463 = vrot.slane %v1455, %v1462
    %v1465 = vunpack.c.l.s4 1934713408
    %v1466 = vunpack.c.0.s8 %v1465
    %v1467 = vlaneseq
    %v1468 = vshrl.u32 %v1467, 7
    %v1469 = vsub.s32 %v1466, %v1468
    %v1470 = vrot.slane %v1456, %v1469
    %v1471 = vcombine.low %v1415, %v1447
    %v1472 = vcombine.high %v1415, %v1447
    %v1473 = vcombine.low %v1422, %v1454
    %v1474 = vcombine.high %v1422, %v1454
    %v1475 = vcombine.low %v1431, %v1463
    %v1476 = vcombine.high %v1431, %v1463
    %v1477 = vcombine.low %v1438, %v1470
    %v1478 = vcombine.high %v1438, %v1470
    %v1479 = vcombine.low %v31, %v120
    %v1480 = vcombine.high %v31, %v120
    %v1482 = vunpack.c.l.s4 1983009808
    %v1483 = vunpack.c.0.s8 %v1482
    %v1484 = vlaneseq
    %v1485 = vshrl.u32 %v1484, 7
    %v1486 = vsub.s32 %v1483, %v1485
    %v1487 = vrot.slane %v1479, %v1486
    %v1489 = vunpack.c.l.s4 1983009808
    %v1490 = vunpack.c.0.s8 %v1489
    %v1491 = vlaneseq
    %v1492 = vshrl.u32 %v1491, 7
    %v1493 = vsub.s32 %v1490, %v1492
    %v1494 = vrot.slane %v1480, %v1493
    %v1495 = vcombine.low %v72, %v168
    %v1496 = vcombine.high %v72, %v168
    %v1498 = vunpack.c.l.s4 1983009808
    %v1499 = vunpack.c.0.s8 %v1498
    %v1500 = vlaneseq
    %v1501 = vshrl.u32 %v1500, 7
    %v1502 = vsub.s32 %v1499, %v1501
    %v1503 = vrot.slane %v1495, %v1502
    %v1505 = vunpack.c.l.s4 1983009808
    %v1506 = vunpack.c.0.s8 %v1505
    %v1507 = vlaneseq
    %v1508 = vshrl.u32 %v1507, 7
    %v1509 = vsub.s32 %v1506, %v1508
    %v1510 = vrot.slane %v1496, %v1509
    %v1511 = vcombine.low %v216, %v312
    %v1512 = vcombine.high %v216, %v312
    %v1514 = vunpack.c.l.s4 1983009808
    %v1515 = vunpack.c.0.s8 %v1514
    %v1516 = vlaneseq
    %v1517 = vshrl.u32 %v1516, 7
    %v1518 = vsub.s32 %v1515, %v1517
    %v1519 = vrot.slane %v1511, %v1518
    %v1521 = vunpack.c.l.s4 1983009808
    %v1522 = vunpack.c.0.s8 %v1521
    %v1523 = vlaneseq
    %v1524 = vshrl.u32 %v1523, 7
    %v1525 = vsub.s32 %v1522, %v1524
    %v1526 = vrot.slane %v1512, %v1525
    %v1527 = vcombine.low %v264, %v360
    %v1528 = vcombine.high %v264, %v360
    %v1530 = vunpack.c.l.s4 1983009808
    %v1531 = vunpack.c.0.s8 %v1530
    %v1532 = vlaneseq
    %v1533 = vshrl.u32 %v1532, 7
    %v1534 = vsub.s32 %v1531, %v1533
    %v1535 = vrot.slane %v1527, %v1534
    %v1537 = vunpack.c.l.s4 1983009808
    %v1538 = vunpack.c.0.s8 %v1537
    %v1539 = vlaneseq
    %v1540 = vshrl.u32 %v1539, 7
    %v1541 = vsub.s32 %v1538, %v1540
    %v1542 = vrot.slane %v1528, %v1541
    %v1543 = vcombine.low %v1487, %v1503
    %v1544 = vcombine.high %v1487, %v1503
    %v1546 = vunpack.c.l.s4 1934713408
    %v1547 = vunpack.c.0.s8 %v1546
    %v1548 = vlaneseq
    %v1549 = vshrl.u32 %v1548, 7
    %v1550 = vsub.s32 %v1547, %v1549
    %v1551 = vrot.slane %v1543, %v1550
    %v1553 = vunpack.c.l.s4 1934713408
    %v1554 = vunpack.c.0.s8 %v1553
    %v1555 = vlaneseq
    %v1556 = vshrl.u32 %v1555, 7
    %v1557 = vsub.s32 %v1554, %v1556
    %v1558 = vrot.slane %v1544, %v1557
    %v1559 = vcombine.low %v1494, %v1510
    %v1560 = vcombine.high %v1494, %v1510
    %v1562 = vunpack.c.l.s4 1934713408
    %v1563 = vunpack.c.0.s8 %v1562
    %v1564 = vlaneseq
    %v1565 = vshrl.u32 %v1564, 7
    %v1566 = vsub.s32 %v1563, %v1565
    %v1567 = vrot.slane %v1559, %v1566
    %v1569 = vunpack.c.l.s4 1934713408
    %v1570 = vunpack.c.0.s8 %v1569
    %v1571 = vlaneseq
    %v1572 = vshrl.u32 %v1571, 7
    %v1573 = vsub.s32 %v1570, %v1572
    %v1574 = vrot.slane %v1560, %v1573
    %v1575 = vcombine.low %v1519, %v1535
    %v1576 = vcombine.high %v1519, %v1535
    %v1578 = vunpack.c.l.s4 1934713408
    %v1579 = vunpack.c.0.s8 %v1578
    %v1580 = vlaneseq
    %v1581 = vshrl.u32 %v1580, 7
    %v1582 = vsub.s32 %v1579, %v1581
    %v1583 = vrot.slane %v1575, %v1582
    %v1585 = vunpack.c.l.s4 1934713408
    %v1586 = vunpack.c.0.s8 %v1585
    %v1587 = vlaneseq
    %v1588 = vshrl.u32 %v1587, 7
    %v1589 = vsub.s32 %v1586, %v1588
    %v1590 = vrot.slane %v1576, %v1589
    %v1591 = vcombine.low %v1526, %v1542
    %v1592 = vcombine.high %v1526, %v1542
    %v1594 = vunpack.c.l.s4 1934713408
    %v1595 = vunpack.c.0.s8 %v1594
    %v1596 = vlaneseq
    %v1597 = vshrl.u32 %v1596, 7
    %v1598 = vsub.s32 %v1595, %v1597
    %v1599 = vrot.slane %v1591, %v1598
    %v1601 = vunpack.c.l.s4 1934713408
    %v1602 = vunpack.c.0.s8 %v1601
    %v1603 = vlaneseq
    %v1604 = vshrl.u32 %v1603, 7
    %v1605 = vsub.s32 %v1602, %v1604
    %v1606 = vrot.slane %v1592, %v1605
    %v1607 = vcombine.low %v1551, %v1583
    %v1608 = vcombine.high %v1551, %v1583
    %v1609 = vcombine.low %v1558, %v1590
    %v1610 = vcombine.high %v1558, %v1590
    %v1611 = vcombine.low %v1567, %v1599
    %v1612 = vcombine.high %v1567, %v1599
    %v1613 = vcombine.low %v1574, %v1606
    %v1614 = vcombine.high %v1574, %v1606
    %v1615 = vcombine.low %v32, %v122
    %v1616 = vcombine.high %v32, %v122
    %v1618 = vunpack.c.l.s4 1983009808
    %v1619 = vunpack.c.0.s8 %v1618
    %v1620 = vlaneseq
    %v1621 = vshrl.u32 %v1620, 7
    %v1622 = vsub.s32 %v1619, %v1621
    %v1623 = vrot.slane %v1615, %v1622
    %v1625 = vunpack.c.l.s4 1983009808
    %v1626 = vunpack.c.0.s8 %v1625
    %v1627 = vlaneseq
    %v1628 = vshrl.u32 %v1627, 7
    %v1629 = vsub.s32 %v1626, %v1628
    %v1630 = vrot.slane %v1616, %v1629
    %v1631 = vcombine.low %v74, %v170
    %v1632 = vcombine.high %v74, %v170
    %v1634 = vunpack.c.l.s4 1983009808
    %v1635 = vunpack.c.0.s8 %v1634
    %v1636 = vlaneseq
    %v1637 = vshrl.u32 %v1636, 7
    %v1638 = vsub.s32 %v1635, %v1637
    %v1639 = vrot.slane %v1631, %v1638
    %v1641 = vunpack.c.l.s4 1983009808
    %v1642 = vunpack.c.0.s8 %v1641
    %v1643 = vlaneseq
    %v1644 = vshrl.u32 %v1643, 7
    %v1645 = vsub.s32 %v1642, %v1644
    %v1646 = vrot.slane %v1632, %v1645
    %v1647 = vcombine.low %v218, %v314
    %v1648 = vcombine.high %v218, %v314
    %v1650 = vunpack.c.l.s4 1983009808
    %v1651 = vunpack.c.0.s8 %v1650
    %v1652 = vlaneseq
    %v1653 = vshrl.u32 %v1652, 7
    %v1654 = vsub.s32 %v1651, %v1653
    %v1655 = vrot.slane %v1647, %v1654
    %v1657 = vunpack.c.l.s4 1983009808
    %v1658 = vunpack.c.0.s8 %v1657
    %v1659 = vlaneseq
    %v1660 = vshrl.u32 %v1659, 7
    %v1661 = vsub.s32 %v1658, %v1660
    %v1662 = vrot.slane %v1648, %v1661
    %v1663 = vcombine.low %v266, %v362
    %v1664 = vcombine.high %v266, %v362
    %v1666 = vunpack.c.l.s4 1983009808
    %v1667 = vunpack.c.0.s8 %v1666
    %v1668 = vlaneseq
    %v1669 = vshrl.u32 %v1668, 7
    %v1670 = vsub.s32 %v1667, %v1669
    %v1671 = vrot.slane %v1663, %v1670
    %v1673 = vunpack.c.l.s4 1983009808
    %v1674 = vunpack.c.0.s8 %v1673
    %v1675 = vlaneseq
    %v1676 = vshrl.u32 %v1675, 7
    %v1677 = vsub.s32 %v1674, %v1676
    %v1678 = vrot.slane %v1664, %v1677
    %v1679 = vcombine.low %v1623, %v1639
    %v1680 = vcombine.high %v1623, %v1639
    %v1682 = vunpack.c.l.s4 1934713408
    %v1683 = vunpack.c.0.s8 %v1682
    %v1684 = vlaneseq
    %v1685 = vshrl.u32 %v1684, 7
    %v1686 = vsub.s32 %v1683, %v1685
    %v1687 = vrot.slane %v1679, %v1686
    %v1689 = vunpack.c.l.s4 1934713408
    %v1690 = vunpack.c.0.s8 %v1689
    %v1691 = vlaneseq
    %v1692 = vshrl.u32 %v1691, 7
    %v1693 = vsub.s32 %v1690, %v1692
    %v1694 = vrot.slane %v1680, %v1693
    %v1695 = vcombine.low %v1630, %v1646
    %v1696 = vcombine.high %v1630, %v1646
    %v1698 = vunpack.c.l.s4 1934713408
    %v1699 = vunpack.c.0.s8 %v1698
    %v1700 = vlaneseq
    %v1701 = vshrl.u32 %v1700, 7
    %v1702 = vsub.s32 %v1699, %v1701
    %v1703 = vrot.slane %v1695, %v1702
    %v1705 = vunpack.c.l.s4 1934713408
    %v1706 = vunpack.c.0.s8 %v1705
    %v1707 = vlaneseq
    %v1708 = vshrl.u32 %v1707, 7
    %v1709 = vsub.s32 %v1706, %v1708
    %v1710 = vrot.slane %v1696, %v1709
    %v1711 = vcombine.low %v1655, %v1671
    %v1712 = vcombine.high %v1655, %v1671
    %v1714 = vunpack.c.l.s4 1934713408
    %v1715 = vunpack.c.0.s8 %v1714
    %v1716 = vlaneseq
    %v1717 = vshrl.u32 %v1716, 7
    %v1718 = vsub.s32 %v1715, %v1717
    %v1719 = vrot.slane %v1711, %v1718
    %v1721 = vunpack.c.l.s4 1934713408
    %v1722 = vunpack.c.0.s8 %v1721
    %v1723 = vlaneseq
    %v1724 = vshrl.u32 %v1723, 7
    %v1725 = vsub.s32 %v1722, %v1724
    %v1726 = vrot.slane %v1712, %v1725
    %v1727 = vcombine.low %v1662, %v1678
    %v1728 = vcombine.high %v1662, %v1678
    %v1730 = vunpack.c.l.s4 1934713408
    %v1731 = vunpack.c.0.s8 %v1730
    %v1732 = vlaneseq
    %v1733 = vshrl.u32 %v1732, 7
    %v1734 = vsub.s32 %v1731, %v1733
    %v1735 = vrot.slane %v1727, %v1734
    %v1737 = vunpack.c.l.s4 1934713408
    %v1738 = vunpack.c.0.s8 %v1737
    %v1739 = vlaneseq
    %v1740 = vshrl.u32 %v1739, 7
    %v1741 = vsub.s32 %v1738, %v1740
    %v1742 = vrot.slane %v1728, %v1741
    %v1743 = vcombine.low %v1687, %v1719
    %v1744 = vcombine.high %v1687, %v1719
    %v1745 = vcombine.low %v1694, %v1726
    %v1746 = vcombine.high %v1694, %v1726
    %v1747 = vcombine.low %v1703, %v1735
    %v1748 = vcombine.high %v1703, %v1735
    %v1749 = vcombine.low %v1710, %v1742
    %v1750 = vcombine.high %v1710, %v1742
    %v1751 = vcombine.low %v33, %v124
    %v1752 = vcombine.high %v33, %v124
    %v1754 = vunpack.c.l.s4 1983009808
    %v1755 = vunpack.c.0.s8 %v1754
    %v1756 = vlaneseq
    %v1757 = vshrl.u32 %v1756, 7
    %v1758 = vsub.s32 %v1755, %v1757
    %v1759 = vrot.slane %v1751, %v1758
    %v1761 = vunpack.c.l.s4 1983009808
    %v1762 = vunpack.c.0.s8 %v1761
    %v1763 = vlaneseq
    %v1764 = vshrl.u32 %v1763, 7
    %v1765 = vsub.s32 %v1762, %v1764
    %v1766 = vrot.slane %v1752, %v1765
    %v1767 = vcombine.low %v76, %v172
    %v1768 = vcombine.high %v76, %v172
    %v1770 = vunpack.c.l.s4 1983009808
    %v1771 = vunpack.c.0.s8 %v1770
    %v1772 = vlaneseq
    %v1773 = vshrl.u32 %v1772, 7
    %v1774 = vsub.s32 %v1771, %v1773
    %v1775 = vrot.slane %v1767, %v1774
    %v1777 = vunpack.c.l.s4 1983009808
    %v1778 = vunpack.c.0.s8 %v1777
    %v1779 = vlaneseq
    %v1780 = vshrl.u32 %v1779, 7
    %v1781 = vsub.s32 %v1778, %v1780
    %v1782 = vrot.slane %v1768, %v1781
    %v1783 = vcombine.low %v220, %v316
    %v1784 = vcombine.high %v220, %v316
    %v1786 = vunpack.c.l.s4 1983009808
    %v1787 = vunpack.c.0.s8 %v1786
    %v1788 = vlaneseq
    %v1789 = vshrl.u32 %v1788, 7
    %v1790 = vsub.s32 %v1787, %v1789
    %v1791 = vrot.slane %v1783, %v1790
    %v1793 = vunpack.c.l.s4 1983009808
    %v1794 = vunpack.c.0.s8 %v1793
    %v1795 = vlaneseq
    %v1796 = vshrl.u32 %v1795, 7
    %v1797 = vsub.s32 %v1794, %v1796
    %v1798 = vrot.slane %v1784, %v1797
    %v1799 = vcombine.low %v268, %v364
    %v1800 = vcombine.high %v268, %v364
    %v1802 = vunpack.c.l.s4 1983009808
    %v1803 = vunpack.c.0.s8 %v1802
    %v1804 = vlaneseq
    %v1805 = vshrl.u32 %v1804, 7
    %v1806 = vsub.s32 %v1803, %v1805
    %v1807 = vrot.slane %v1799, %v1806
    %v1809 = vunpack.c.l.s4 1983009808
    %v1810 = vunpack.c.0.s8 %v1809
    %v1811 = vlaneseq
    %v1812 = vshrl.u32 %v1811, 7
    %v1813 = vsub.s32 %v1810, %v1812
    %v1814 = vrot.slane %v1800, %v1813
    %v1815 = vcombine.low %v1759, %v1775
    %v1816 = vcombine.high %v1759, %v1775
    %v1818 = vunpack.c.l.s4 1934713408
    %v1819 = vunpack.c.0.s8 %v1818
    %v1820 = vlaneseq
    %v1821 = vshrl.u32 %v1820, 7
    %v1822 = vsub.s32 %v1819, %v1821
    %v1823 = vrot.slane %v1815, %v1822
    %v1825 = vunpack.c.l.s4 1934713408
    %v1826 = vunpack.c.0.s8 %v1825
    %v1827 = vlaneseq
    %v1828 = vshrl.u32 %v1827, 7
    %v1829 = vsub.s32 %v1826, %v1828
    %v1830 = vrot.slane %v1816, %v1829
    %v1831 = vcombine.low %v1766, %v1782
    %v1832 = vcombine.high %v1766, %v1782
    %v1834 = vunpack.c.l.s4 1934713408
    %v1835 = vunpack.c.0.s8 %v1834
    %v1836 = vlaneseq
    %v1837 = vshrl.u32 %v1836, 7
    %v1838 = vsub.s32 %v1835, %v1837
    %v1839 = vrot.slane %v1831, %v1838
    %v1841 = vunpack.c.l.s4 1934713408
    %v1842 = vunpack.c.0.s8 %v1841
    %v1843 = vlaneseq
    %v1844 = vshrl.u32 %v1843, 7
    %v1845 = vsub.s32 %v1842, %v1844
    %v1846 = vrot.slane %v1832, %v1845
    %v1847 = vcombine.low %v1791, %v1807
    %v1848 = vcombine.high %v1791, %v1807
    %v1850 = vunpack.c.l.s4 1934713408
    %v1851 = vunpack.c.0.s8 %v1850
    %v1852 = vlaneseq
    %v1853 = vshrl.u32 %v1852, 7
    %v1854 = vsub.s32 %v1851, %v1853
    %v1855 = vrot.slane %v1847, %v1854
    %v1857 = vunpack.c.l.s4 1934713408
    %v1858 = vunpack.c.0.s8 %v1857
    %v1859 = vlaneseq
    %v1860 = vshrl.u32 %v1859, 7
    %v1861 = vsub.s32 %v1858, %v1860
    %v1862 = vrot.slane %v1848, %v1861
    %v1863 = vcombine.low %v1798, %v1814
    %v1864 = vcombine.high %v1798, %v1814
    %v1866 = vunpack.c.l.s4 1934713408
    %v1867 = vunpack.c.0.s8 %v1866
    %v1868 = vlaneseq
    %v1869 = vshrl.u32 %v1868, 7
    %v1870 = vsub.s32 %v1867, %v1869
    %v1871 = vrot.slane %v1863, %v1870
    %v1873 = vunpack.c.l.s4 1934713408
    %v1874 = vunpack.c.0.s8 %v1873
    %v1875 = vlaneseq
    %v1876 = vshrl.u32 %v1875, 7
    %v1877 = vsub.s32 %v1874, %v1876
    %v1878 = vrot.slane %v1864, %v1877
    %v1879 = vcombine.low %v1823, %v1855
    %v1880 = vcombine.high %v1823, %v1855
    %v1881 = vcombine.low %v1830, %v1862
    %v1882 = vcombine.high %v1830, %v1862
    %v1883 = vcombine.low %v1839, %v1871
    %v1884 = vcombine.high %v1839, %v1871
    %v1885 = vcombine.low %v1846, %v1878
    %v1886 = vcombine.high %v1846, %v1878
    %v1887 = vcombine.low %v34, %v126
    %v1888 = vcombine.high %v34, %v126
    %v1890 = vunpack.c.l.s4 1983009808
    %v1891 = vunpack.c.0.s8 %v1890
    %v1892 = vlaneseq
    %v1893 = vshrl.u32 %v1892, 7
    %v1894 = vsub.s32 %v1891, %v1893
    %v1895 = vrot.slane %v1887, %v1894
    %v1897 = vunpack.c.l.s4 1983009808
    %v1898 = vunpack.c.0.s8 %v1897
    %v1899 = vlaneseq
    %v1900 = vshrl.u32 %v1899, 7
    %v1901 = vsub.s32 %v1898, %v1900
    %v1902 = vrot.slane %v1888, %v1901
    %v1903 = vcombine.low %v78, %v174
    %v1904 = vcombine.high %v78, %v174
    %v1906 = vunpack.c.l.s4 1983009808
    %v1907 = vunpack.c.0.s8 %v1906
    %v1908 = vlaneseq
    %v1909 = vshrl.u32 %v1908, 7
    %v1910 = vsub.s32 %v1907, %v1909
    %v1911 = vrot.slane %v1903, %v1910
    %v1913 = vunpack.c.l.s4 1983009808
    %v1914 = vunpack.c.0.s8 %v1913
    %v1915 = vlaneseq
    %v1916 = vshrl.u32 %v1915, 7
    %v1917 = vsub.s32 %v1914, %v1916
    %v1918 = vrot.slane %v1904, %v1917
    %v1919 = vcombine.low %v222, %v318
    %v1920 = vcombine.high %v222, %v318
    %v1922 = vunpack.c.l.s4 1983009808
    %v1923 = vunpack.c.0.s8 %v1922
    %v1924 = vlaneseq
    %v1925 = vshrl.u32 %v1924, 7
    %v1926 = vsub.s32 %v1923, %v1925
    %v1927 = vrot.slane %v1919, %v1926
    %v1929 = vunpack.c.l.s4 1983009808
    %v1930 = vunpack.c.0.s8 %v1929
    %v1931 = vlaneseq
    %v1932 = vshrl.u32 %v1931, 7
    %v1933 = vsub.s32 %v1930, %v1932
    %v1934 = vrot.slane %v1920, %v1933
    %v1935 = vcombine.low %v270, %v366
    %v1936 = vcombine.high %v270, %v366
    %v1938 = vunpack.c.l.s4 1983009808
    %v1939 = vunpack.c.0.s8 %v1938
    %v1940 = vlaneseq
    %v1941 = vshrl.u32 %v1940, 7
    %v1942 = vsub.s32 %v1939, %v1941
    %v1943 = vrot.slane %v1935, %v1942
    %v1945 = vunpack.c.l.s4 1983009808
    %v1946 = vunpack.c.0.s8 %v1945
    %v1947 = vlaneseq
    %v1948 = vshrl.u32 %v1947, 7
    %v1949 = vsub.s32 %v1946, %v1948
    %v1950 = vrot.slane %v1936, %v1949
    %v1951 = vcombine.low %v1895, %v1911
    %v1952 = vcombine.high %v1895, %v1911
    %v1954 = vunpack.c.l.s4 1934713408
    %v1955 = vunpack.c.0.s8 %v1954
    %v1956 = vlaneseq
    %v1957 = vshrl.u32 %v1956, 7
    %v1958 = vsub.s32 %v1955, %v1957
    %v1959 = vrot.slane %v1951, %v1958
    %v1961 = vunpack.c.l.s4 1934713408
    %v1962 = vunpack.c.0.s8 %v1961
    %v1963 = vlaneseq
    %v1964 = vshrl.u32 %v1963, 7
    %v1965 = vsub.s32 %v1962, %v1964
    %v1966 = vrot.slane %v1952, %v1965
    %v1967 = vcombine.low %v1902, %v1918
    %v1968 = vcombine.high %v1902, %v1918
    %v1970 = vunpack.c.l.s4 1934713408
    %v1971 = vunpack.c.0.s8 %v1970
    %v1972 = vlaneseq
    %v1973 = vshrl.u32 %v1972, 7
    %v1974 = vsub.s32 %v1971, %v1973
    %v1975 = vrot.slane %v1967, %v1974
    %v1977 = vunpack.c.l.s4 1934713408
    %v1978 = vunpack.c.0.s8 %v1977
    %v1979 = vlaneseq
    %v1980 = vshrl.u32 %v1979, 7
    %v1981 = vsub.s32 %v1978, %v1980
    %v1982 = vrot.slane %v1968, %v1981
    %v1983 = vcombine.low %v1927, %v1943
    %v1984 = vcombine.high %v1927, %v1943
    %v1986 = vunpack.c.l.s4 1934713408
    %v1987 = vunpack.c.0.s8 %v1986
    %v1988 = vlaneseq
    %v1989 = vshrl.u32 %v1988, 7
    %v1990 = vsub.s32 %v1987, %v1989
    %v1991 = vrot.slane %v1983, %v1990
    %v1993 = vunpack.c.l.s4 1934713408
    %v1994 = vunpack.c.0.s8 %v1993
    %v1995 = vlaneseq
    %v1996 = vshrl.u32 %v1995, 7
    %v1997 = vsub.s32 %v1994, %v1996
    %v1998 = vrot.slane %v1984, %v1997
    %v1999 = vcombine.low %v1934, %v1950
    %v2000 = vcombine.high %v1934, %v1950
    %v2002 = vunpack.c.l.s4 1934713408
    %v2003 = vunpack.c.0.s8 %v2002
    %v2004 = vlaneseq
    %v2005 = vshrl.u32 %v2004, 7
    %v2006 = vsub.s32 %v2003, %v2005
    %v2007 = vrot.slane %v1999, %v2006
    %v2009 = vunpack.c.l.s4 1934713408
    %v2010 = vunpack.c.0.s8 %v2009
    %v2011 = vlaneseq
    %v2012 = vshrl.u32 %v2011, 7
    %v2013 = vsub.s32 %v2010, %v2012
    %v2014 = vrot.slane %v2000, %v2013
    %v2015 = vcombine.low %v1959, %v1991
    %v2016 = vcombine.high %v1959, %v1991
    %v2017 = vcombine.low %v1966, %v1998
    %v2018 = vcombine.high %v1966, %v1998
    %v2019 = vcombine.low %v1975, %v2007
    %v2020 = vcombine.high %v1975, %v2007
    %v2021 = vcombine.low %v1982, %v2014
    %v2022 = vcombine.high %v1982, %v2014
    %v2023 = vcombine.low %v35, %v128
    %v2024 = vcombine.high %v35, %v128
    %v2026 = vunpack.c.l.s4 1983009808
    %v2027 = vunpack.c.0.s8 %v2026
    %v2028 = vlaneseq
    %v2029 = vshrl.u32 %v2028, 7
    %v2030 = vsub.s32 %v2027, %v2029
    %v2031 = vrot.slane %v2023, %v2030
    %v2033 = vunpack.c.l.s4 1983009808
    %v2034 = vunpack.c.0.s8 %v2033
    %v2035 = vlaneseq
    %v2036 = vshrl.u32 %v2035, 7
    %v2037 = vsub.s32 %v2034, %v2036
    %v2038 = vrot.slane %v2024, %v2037
    %v2039 = vcombine.low %v80, %v176
    %v2040 = vcombine.high %v80, %v176
    %v2042 = vunpack.c.l.s4 1983009808
    %v2043 = vunpack.c.0.s8 %v2042
    %v2044 = vlaneseq
    %v2045 = vshrl.u32 %v2044, 7
    %v2046 = vsub.s32 %v2043, %v2045
    %v2047 = vrot.slane %v2039, %v2046
    %v2049 = vunpack.c.l.s4 1983009808
    %v2050 = vunpack.c.0.s8 %v2049
    %v2051 = vlaneseq
    %v2052 = vshrl.u32 %v2051, 7
    %v2053 = vsub.s32 %v2050, %v2052
    %v2054 = vrot.slane %v2040, %v2053
    %v2055 = vcombine.low %v224, %v320
    %v2056 = vcombine.high %v224, %v320
    %v2058 = vunpack.c.l.s4 1983009808
    %v2059 = vunpack.c.0.s8 %v2058
    %v2060 = vlaneseq
    %v2061 = vshrl.u32 %v2060, 7
    %v2062 = vsub.s32 %v2059, %v2061
    %v2063 = vrot.slane %v2055, %v2062
    %v2065 = vunpack.c.l.s4 1983009808
    %v2066 = vunpack.c.0.s8 %v2065
    %v2067 = vlaneseq
    %v2068 = vshrl.u32 %v2067, 7
    %v2069 = vsub.s32 %v2066, %v2068
    %v2070 = vrot.slane %v2056, %v2069
    %v2071 = vcombine.low %v272, %v368
    %v2072 = vcombine.high %v272, %v368
    %v2074 = vunpack.c.l.s4 1983009808
    %v2075 = vunpack.c.0.s8 %v2074
    %v2076 = vlaneseq
    %v2077 = vshrl.u32 %v2076, 7
    %v2078 = vsub.s32 %v2075, %v2077
    %v2079 = vrot.slane %v2071, %v2078
    %v2081 = vunpack.c.l.s4 1983009808
    %v2082 = vunpack.c.0.s8 %v2081
    %v2083 = vlaneseq
    %v2084 = vshrl.u32 %v2083, 7
    %v2085 = vsub.s32 %v2082, %v2084
    %v2086 = vrot.slane %v2072, %v2085
    %v2087 = vcombine.low %v2031, %v2047
    %v2088 = vcombine.high %v2031, %v2047
    %v2090 = vunpack.c.l.s4 1934713408
    %v2091 = vunpack.c.0.s8 %v2090
    %v2092 = vlaneseq
    %v2093 = vshrl.u32 %v2092, 7
    %v2094 = vsub.s32 %v2091, %v2093
    %v2095 = vrot.slane %v2087, %v2094
    %v2097 = vunpack.c.l.s4 1934713408
    %v2098 = vunpack.c.0.s8 %v2097
    %v2099 = vlaneseq
    %v2100 = vshrl.u32 %v2099, 7
    %v2101 = vsub.s32 %v2098, %v2100
    %v2102 = vrot.slane %v2088, %v2101
    %v2103 = vcombine.low %v2038, %v2054
    %v2104 = vcombine.high %v2038, %v2054
    %v2106 = vunpack.c.l.s4 1934713408
    %v2107 = vunpack.c.0.s8 %v2106
    %v2108 = vlaneseq
    %v2109 = vshrl.u32 %v2108, 7
    %v2110 = vsub.s32 %v2107, %v2109
    %v2111 = vrot.slane %v2103, %v2110
    %v2113 = vunpack.c.l.s4 1934713408
    %v2114 = vunpack.c.0.s8 %v2113
    %v2115 = vlaneseq
    %v2116 = vshrl.u32 %v2115, 7
    %v2117 = vsub.s32 %v2114, %v2116
    %v2118 = vrot.slane %v2104, %v2117
    %v2119 = vcombine.low %v2063, %v2079
    %v2120 = vcombine.high %v2063, %v2079
    %v2122 = vunpack.c.l.s4 1934713408
    %v2123 = vunpack.c.0.s8 %v2122
    %v2124 = vlaneseq
    %v2125 = vshrl.u32 %v2124, 7
    %v2126 = vsub.s32 %v2123, %v2125
    %v2127 = vrot.slane %v2119, %v2126
    %v2129 = vunpack.c.l.s4 1934713408
    %v2130 = vunpack.c.0.s8 %v2129
    %v2131 = vlaneseq
    %v2132 = vshrl.u32 %v2131, 7
    %v2133 = vsub.s32 %v2130, %v2132
    %v2134 = vrot.slane %v2120, %v2133
    %v2135 = vcombine.low %v2070, %v2086
    %v2136 = vcombine.high %v2070, %v2086
    %v2138 = vunpack.c.l.s4 1934713408
    %v2139 = vunpack.c.0.s8 %v2138
    %v2140 = vlaneseq
    %v2141 = vshrl.u32 %v2140, 7
    %v2142 = vsub.s32 %v2139, %v2141
    %v2143 = vrot.slane %v2135, %v2142
    %v2145 = vunpack.c.l.s4 1934713408
    %v2146 = vunpack.c.0.s8 %v2145
    %v2147 = vlaneseq
    %v2148 = vshrl.u32 %v2147, 7
    %v2149 = vsub.s32 %v2146, %v2148
    %v2150 = vrot.slane %v2136, %v2149
    %v2151 = vcombine.low %v2095, %v2127
    %v2152 = vcombine.high %v2095, %v2127
    %v2153 = vcombine.low %v2102, %v2134
    %v2154 = vcombine.high %v2102, %v2134
    %v2155 = vcombine.low %v2111, %v2143
    %v2156 = vcombine.high %v2111, %v2143
    %v2157 = vcombine.low %v2118, %v2150
    %v2158 = vcombine.high %v2118, %v2150
    %v2159 = vcombine.low %v36, %v130
    %v2160 = vcombine.high %v36, %v130
    %v2162 = vunpack.c.l.s4 1983009808
    %v2163 = vunpack.c.0.s8 %v2162
    %v2164 = vlaneseq
    %v2165 = vshrl.u32 %v2164, 7
    %v2166 = vsub.s32 %v2163, %v2165
    %v2167 = vrot.slane %v2159, %v2166
    %v2169 = vunpack.c.l.s4 1983009808
    %v2170 = vunpack.c.0.s8 %v2169
    %v2171 = vlaneseq
    %v2172 = vshrl.u32 %v2171, 7
    %v2173 = vsub.s32 %v2170, %v2172
    %v2174 = vrot.slane %v2160, %v2173
    %v2175 = vcombine.low %v82, %v178
    %v2176 = vcombine.high %v82, %v178
    %v2178 = vunpack.c.l.s4 1983009808
    %v2179 = vunpack.c.0.s8 %v2178
    %v2180 = vlaneseq
    %v2181 = vshrl.u32 %v2180, 7
    %v2182 = vsub.s32 %v2179, %v2181
    %v2183 = vrot.slane %v2175, %v2182
    %v2185 = vunpack.c.l.s4 1983009808
    %v2186 = vunpack.c.0.s8 %v2185
    %v2187 = vlaneseq
    %v2188 = vshrl.u32 %v2187, 7
    %v2189 = vsub.s32 %v2186, %v2188
    %v2190 = vrot.slane %v2176, %v2189
    %v2191 = vcombine.low %v226, %v322
    %v2192 = vcombine.high %v226, %v322
    %v2194 = vunpack.c.l.s4 1983009808
    %v2195 = vunpack.c.0.s8 %v2194
    %v2196 = vlaneseq
    %v2197 = vshrl.u32 %v2196, 7
    %v2198 = vsub.s32 %v2195, %v2197
    %v2199 = vrot.slane %v2191, %v2198
    %v2201 = vunpack.c.l.s4 1983009808
    %v2202 = vunpack.c.0.s8 %v2201
    %v2203 = vlaneseq
    %v2204 = vshrl.u32 %v2203, 7
    %v2205 = vsub.s32 %v2202, %v2204
    %v2206 = vrot.slane %v2192, %v2205
    %v2207 = vcombine.low %v274, %v370
    %v2208 = vcombine.high %v274, %v370
    %v2210 = vunpack.c.l.s4 1983009808
    %v2211 = vunpack.c.0.s8 %v2210
    %v2212 = vlaneseq
    %v2213 = vshrl.u32 %v2212, 7
    %v2214 = vsub.s32 %v2211, %v2213
    %v2215 = vrot.slane %v2207, %v2214
    %v2217 = vunpack.c.l.s4 1983009808
    %v2218 = vunpack.c.0.s8 %v2217
    %v2219 = vlaneseq
    %v2220 = vshrl.u32 %v2219, 7
    %v2221 = vsub.s32 %v2218, %v2220
    %v2222 = vrot.slane %v2208, %v2221
    %v2223 = vcombine.low %v2167, %v2183
    %v2224 = vcombine.high %v2167, %v2183
    %v2226 = vunpack.c.l.s4 1934713408
    %v2227 = vunpack.c.0.s8 %v2226
    %v2228 = vlaneseq
    %v2229 = vshrl.u32 %v2228, 7
    %v2230 = vsub.s32 %v2227, %v2229
    %v2231 = vrot.slane %v2223, %v2230
    %v2233 = vunpack.c.l.s4 1934713408
    %v2234 = vunpack.c.0.s8 %v2233
    %v2235 = vlaneseq
    %v2236 = vshrl.u32 %v2235, 7
    %v2237 = vsub.s32 %v2234, %v2236
    %v2238 = vrot.slane %v2224, %v2237
    %v2239 = vcombine.low %v2174, %v2190
    %v2240 = vcombine.high %v2174, %v2190
    %v2242 = vunpack.c.l.s4 1934713408
    %v2243 = vunpack.c.0.s8 %v2242
    %v2244 = vlaneseq
    %v2245 = vshrl.u32 %v2244, 7
    %v2246 = vsub.s32 %v2243, %v2245
    %v2247 = vrot.slane %v2239, %v2246
    %v2249 = vunpack.c.l.s4 1934713408
    %v2250 = vunpack.c.0.s8 %v2249
    %v2251 = vlaneseq
    %v2252 = vshrl.u32 %v2251, 7
    %v2253 = vsub.s32 %v2250, %v2252
    %v2254 = vrot.slane %v2240, %v2253
    %v2255 = vcombine.low %v2199, %v2215
    %v2256 = vcombine.high %v2199, %v2215
    %v2258 = vunpack.c.l.s4 1934713408
    %v2259 = vunpack.c.0.s8 %v2258
    %v2260 = vlaneseq
    %v2261 = vshrl.u32 %v2260, 7
    %v2262 = vsub.s32 %v2259, %v2261
    %v2263 = vrot.slane %v2255, %v2262
    %v2265 = vunpack.c.l.s4 1934713408
    %v2266 = vunpack.c.0.s8 %v2265
    %v2267 = vlaneseq
    %v2268 = vshrl.u32 %v2267, 7
    %v2269 = vsub.s32 %v2266, %v2268
    %v2270 = vrot.slane %v2256, %v2269
    %v2271 = vcombine.low %v2206, %v2222
    %v2272 = vcombine.high %v2206, %v2222
    %v2274 = vunpack.c.l.s4 1934713408
    %v2275 = vunpack.c.0.s8 %v2274
    %v2276 = vlaneseq
    %v2277 = vshrl.u32 %v2276, 7
    %v2278 = vsub.s32 %v2275, %v2277
    %v2279 = vrot.slane %v2271, %v2278
    %v2281 = vunpack.c.l.s4 1934713408
    %v2282 = vunpack.c.0.s8 %v2281
    %v2283 = vlaneseq
    %v2284 = vshrl.u32 %v2283, 7
    %v2285 = vsub.s32 %v2282, %v2284
    %v2286 = vrot.slane %v2272, %v2285
    %v2287 = vcombine.low %v2231, %v2263
    %v2288 = vcombine.high %v2231, %v2263
    %v2289 = vcombine.low %v2238, %v2270
    %v2290 = vcombine.high %v2238, %v2270
    %v2291 = vcombine.low %v2247, %v2279
    %v2292 = vcombine.high %v2247, %v2279
    %v2293 = vcombine.low %v2254, %v2286
    %v2294 = vcombine.high %v2254, %v2286
    %v2295 = vcombine.low %v37, %v132
    %v2296 = vcombine.high %v37, %v132
    %v2298 = vunpack.c.l.s4 1983009808
    %v2299 = vunpack.c.0.s8 %v2298
    %v2300 = vlaneseq
    %v2301 = vshrl.u32 %v2300, 7
    %v2302 = vsub.s32 %v2299, %v2301
    %v2303 = vrot.slane %v2295, %v2302
    %v2305 = vunpack.c.l.s4 1983009808
    %v2306 = vunpack.c.0.s8 %v2305
    %v2307 = vlaneseq
    %v2308 = vshrl.u32 %v2307, 7
    %v2309 = vsub.s32 %v2306, %v2308
    %v2310 = vrot.slane %v2296, %v2309
    %v2311 = vcombine.low %v84, %v180
    %v2312 = vcombine.high %v84, %v180
    %v2314 = vunpack.c.l.s4 1983009808
    %v2315 = vunpack.c.0.s8 %v2314
    %v2316 = vlaneseq
    %v2317 = vshrl.u32 %v2316, 7
    %v2318 = vsub.s32 %v2315, %v2317
    %v2319 = vrot.slane %v2311, %v2318
    %v2321 = vunpack.c.l.s4 1983009808
    %v2322 = vunpack.c.0.s8 %v2321
    %v2323 = vlaneseq
    %v2324 = vshrl.u32 %v2323, 7
    %v2325 = vsub.s32 %v2322, %v2324
    %v2326 = vrot.slane %v2312, %v2325
    %v2327 = vcombine.low %v228, %v324
    %v2328 = vcombine.high %v228, %v324
    %v2330 = vunpack.c.l.s4 1983009808
    %v2331 = vunpack.c.0.s8 %v2330
    %v2332 = vlaneseq
    %v2333 = vshrl.u32 %v2332, 7
    %v2334 = vsub.s32 %v2331, %v2333
    %v2335 = vrot.slane %v2327, %v2334
    %v2337 = vunpack.c.l.s4 1983009808
    %v2338 = vunpack.c.0.s8 %v2337
    %v2339 = vlaneseq
    %v2340 = vshrl.u32 %v2339, 7
    %v2341 = vsub.s32 %v2338, %v2340
    %v2342 = vrot.slane %v2328, %v2341
    %v2343 = vcombine.low %v276, %v372
    %v2344 = vcombine.high %v276, %v372
    %v2346 = vunpack.c.l.s4 1983009808
    %v2347 = vunpack.c.0.s8 %v2346
    %v2348 = vlaneseq
    %v2349 = vshrl.u32 %v2348, 7
    %v2350 = vsub.s32 %v2347, %v2349
    %v2351 = vrot.slane %v2343, %v2350
    %v2353 = vunpack.c.l.s4 1983009808
    %v2354 = vunpack.c.0.s8 %v2353
    %v2355 = vlaneseq
    %v2356 = vshrl.u32 %v2355, 7
    %v2357 = vsub.s32 %v2354, %v2356
    %v2358 = vrot.slane %v2344, %v2357
    %v2359 = vcombine.low %v2303, %v2319
    %v2360 = vcombine.high %v2303, %v2319
    %v2362 = vunpack.c.l.s4 1934713408
    %v2363 = vunpack.c.0.s8 %v2362
    %v2364 = vlaneseq
    %v2365 = vshrl.u32 %v2364, 7
    %v2366 = vsub.s32 %v2363, %v2365
    %v2367 = vrot.slane %v2359, %v2366
    %v2369 = vunpack.c.l.s4 1934713408
    %v2370 = vunpack.c.0.s8 %v2369
    %v2371 = vlaneseq
    %v2372 = vshrl.u32 %v2371, 7
    %v2373 = vsub.s32 %v2370, %v2372
    %v2374 = vrot.slane %v2360, %v2373
    %v2375 = vcombine.low %v2310, %v2326
    %v2376 = vcombine.high %v2310, %v2326
    %v2378 = vunpack.c.l.s4 1934713408
    %v2379 = vunpack.c.0.s8 %v2378
    %v2380 = vlaneseq
    %v2381 = vshrl.u32 %v2380, 7
    %v2382 = vsub.s32 %v2379, %v2381
    %v2383 = vrot.slane %v2375, %v2382
    %v2385 = vunpack.c.l.s4 1934713408
    %v2386 = vunpack.c.0.s8 %v2385
    %v2387 = vlaneseq
    %v2388 = vshrl.u32 %v2387, 7
    %v2389 = vsub.s32 %v2386, %v2388
    %v2390 = vrot.slane %v2376, %v2389
    %v2391 = vcombine.low %v2335, %v2351
    %v2392 = vcombine.high %v2335, %v2351
    %v2394 = vunpack.c.l.s4 1934713408
    %v2395 = vunpack.c.0.s8 %v2394
    %v2396 = vlaneseq
    %v2397 = vshrl.u32 %v2396, 7
    %v2398 = vsub.s32 %v2395, %v2397
    %v2399 = vrot.slane %v2391, %v2398
    %v2401 = vunpack.c.l.s4 1934713408
    %v2402 = vunpack.c.0.s8 %v2401
    %v2403 = vlaneseq
    %v2404 = vshrl.u32 %v2403, 7
    %v2405 = vsub.s32 %v2402, %v2404
    %v2406 = vrot.slane %v2392, %v2405
    %v2407 = vcombine.low %v2342, %v2358
    %v2408 = vcombine.high %v2342, %v2358
    %v2410 = vunpack.c.l.s4 1934713408
    %v2411 = vunpack.c.0.s8 %v2410
    %v2412 = vlaneseq
    %v2413 = vshrl.u32 %v2412, 7
    %v2414 = vsub.s32 %v2411, %v2413
    %v2415 = vrot.slane %v2407, %v2414
    %v2417 = vunpack.c.l.s4 1934713408
    %v2418 = vunpack.c.0.s8 %v2417
    %v2419 = vlaneseq
    %v2420 = vshrl.u32 %v2419, 7
    %v2421 = vsub.s32 %v2418, %v2420
    %v2422 = vrot.slane %v2408, %v2421
    %v2423 = vcombine.low %v2367, %v2399
    %v2424 = vcombine.high %v2367, %v2399
    %v2425 = vcombine.low %v2374, %v2406
    %v2426 = vcombine.high %v2374, %v2406
    %v2427 = vcombine.low %v2383, %v2415
    %v2428 = vcombine.high %v2383, %v2415
    %v2429 = vcombine.low %v2390, %v2422
    %v2430 = vcombine.high %v2390, %v2422
    %v2431 = vcombine.low %v38, %v134
    %v2432 = vcombine.high %v38, %v134
    %v2434 = vunpack.c.l.s4 1983009808
    %v2435 = vunpack.c.0.s8 %v2434
    %v2436 = vlaneseq
    %v2437 = vshrl.u32 %v2436, 7
    %v2438 = vsub.s32 %v2435, %v2437
    %v2439 = vrot.slane %v2431, %v2438
    %v2441 = vunpack.c.l.s4 1983009808
    %v2442 = vunpack.c.0.s8 %v2441
    %v2443 = vlaneseq
    %v2444 = vshrl.u32 %v2443, 7
    %v2445 = vsub.s32 %v2442, %v2444
    %v2446 = vrot.slane %v2432, %v2445
    %v2447 = vcombine.low %v86, %v182
    %v2448 = vcombine.high %v86, %v182
    %v2450 = vunpack.c.l.s4 1983009808
    %v2451 = vunpack.c.0.s8 %v2450
    %v2452 = vlaneseq
    %v2453 = vshrl.u32 %v2452, 7
    %v2454 = vsub.s32 %v2451, %v2453
    %v2455 = vrot.slane %v2447, %v2454
    %v2457 = vunpack.c.l.s4 1983009808
    %v2458 = vunpack.c.0.s8 %v2457
    %v2459 = vlaneseq
    %v2460 = vshrl.u32 %v2459, 7
    %v2461 = vsub.s32 %v2458, %v2460
    %v2462 = vrot.slane %v2448, %v2461
    %v2463 = vcombine.low %v230, %v326
    %v2464 = vcombine.high %v230, %v326
    %v2466 = vunpack.c.l.s4 1983009808
    %v2467 = vunpack.c.0.s8 %v2466
    %v2468 = vlaneseq
    %v2469 = vshrl.u32 %v2468, 7
    %v2470 = vsub.s32 %v2467, %v2469
    %v2471 = vrot.slane %v2463, %v2470
    %v2473 = vunpack.c.l.s4 1983009808
    %v2474 = vunpack.c.0.s8 %v2473
    %v2475 = vlaneseq
    %v2476 = vshrl.u32 %v2475, 7
    %v2477 = vsub.s32 %v2474, %v2476
    %v2478 = vrot.slane %v2464, %v2477
    %v2479 = vcombine.low %v278, %v374
    %v2480 = vcombine.high %v278, %v374
    %v2482 = vunpack.c.l.s4 1983009808
    %v2483 = vunpack.c.0.s8 %v2482
    %v2484 = vlaneseq
    %v2485 = vshrl.u32 %v2484, 7
    %v2486 = vsub.s32 %v2483, %v2485
    %v2487 = vrot.slane %v2479, %v2486
    %v2489 = vunpack.c.l.s4 1983009808
    %v2490 = vunpack.c.0.s8 %v2489
    %v2491 = vlaneseq
    %v2492 = vshrl.u32 %v2491, 7
    %v2493 = vsub.s32 %v2490, %v2492
    %v2494 = vrot.slane %v2480, %v2493
    %v2495 = vcombine.low %v2439, %v2455
    %v2496 = vcombine.high %v2439, %v2455
    %v2498 = vunpack.c.l.s4 1934713408
    %v2499 = vunpack.c.0.s8 %v2498
    %v2500 = vlaneseq
    %v2501 = vshrl.u32 %v2500, 7
    %v2502 = vsub.s32 %v2499, %v2501
    %v2503 = vrot.slane %v2495, %v2502
    %v2505 = vunpack.c.l.s4 1934713408
    %v2506 = vunpack.c.0.s8 %v2505
    %v2507 = vlaneseq
    %v2508 = vshrl.u32 %v2507, 7
    %v2509 = vsub.s32 %v2506, %v2508
    %v2510 = vrot.slane %v2496, %v2509
    %v2511 = vcombine.low %v2446, %v2462
    %v2512 = vcombine.high %v2446, %v2462
    %v2514 = vunpack.c.l.s4 1934713408
    %v2515 = vunpack.c.0.s8 %v2514
    %v2516 = vlaneseq
    %v2517 = vshrl.u32 %v2516, 7
    %v2518 = vsub.s32 %v2515, %v2517
    %v2519 = vrot.slane %v2511, %v2518
    %v2521 = vunpack.c.l.s4 1934713408
    %v2522 = vunpack.c.0.s8 %v2521
    %v2523 = vlaneseq
    %v2524 = vshrl.u32 %v2523, 7
    %v2525 = vsub.s32 %v2522, %v2524
    %v2526 = vrot.slane %v2512, %v2525
    %v2527 = vcombine.low %v2471, %v2487
    %v2528 = vcombine.high %v2471, %v2487
    %v2530 = vunpack.c.l.s4 1934713408
    %v2531 = vunpack.c.0.s8 %v2530
    %v2532 = vlaneseq
    %v2533 = vshrl.u32 %v2532, 7
    %v2534 = vsub.s32 %v2531, %v2533
    %v2535 = vrot.slane %v2527, %v2534
    %v2537 = vunpack.c.l.s4 1934713408
    %v2538 = vunpack.c.0.s8 %v2537
    %v2539 = vlaneseq
    %v2540 = vshrl.u32 %v2539, 7
    %v2541 = vsub.s32 %v2538, %v2540
    %v2542 = vrot.slane %v2528, %v2541
    %v2543 = vcombine.low %v2478, %v2494
    %v2544 = vcombine.high %v2478, %v2494
    %v2546 = vunpack.c.l.s4 1934713408
    %v2547 = vunpack.c.0.s8 %v2546
    %v2548 = vlaneseq
    %v2549 = vshrl.u32 %v2548, 7
    %v2550 = vsub.s32 %v2547, %v2549
    %v2551 = vrot.slane %v2543, %v2550
    %v2553 = vunpack.c.l.s4 1934713408
    %v2554 = vunpack.c.0.s8 %v2553
    %v2555 = vlaneseq
    %v2556 = vshrl.u32 %v2555, 7
    %v2557 = vsub.s32 %v2554, %v2556
    %v2558 = vrot.slane %v2544, %v2557
    %v2559 = vcombine.low %v2503, %v2535
    %v2560 = vcombine.high %v2503, %v2535
    %v2561 = vcombine.low %v2510, %v2542
    %v2562 = vcombine.high %v2510, %v2542
    %v2563 = vcombine.low %v2519, %v2551
    %v2564 = vcombine.high %v2519, %v2551
    %v2565 = vcombine.low %v2526, %v2558
    %v2566 = vcombine.high %v2526, %v2558
    %vm2567 = vcmask 15360
    %v2568 = vsel %vm2567, %v519, -inf
    %2569 = vmax.xlane.f32.xlu0 %v2568
    %v2570 = vpop.xlane.xlu0 %2569
    %v2571 = vsel %vm2567, %v520, -inf
    %2572 = vmax.xlane.f32.xlu0 %v2571
    %v2573 = vpop.xlane.xlu0 %2572
    %v2574 = vsel %vm2567, %v521, -inf
    %2575 = vmax.xlane.f32.xlu0 %v2574
    %v2576 = vpop.xlane.xlu0 %2575
    %v2577 = vsel %vm2567, %v522, -inf
    %2578 = vmax.xlane.f32.xlu0 %v2577
    %v2579 = vpop.xlane.xlu0 %2578
    %v2580 = vsel %vm2567, %v523, -inf
    %2581 = vmax.xlane.f32.xlu0 %v2580
    %v2582 = vpop.xlane.xlu0 %2581
    %v2583 = vsel %vm2567, %v524, -inf
    %2584 = vmax.xlane.f32.xlu0 %v2583
    %v2585 = vpop.xlane.xlu0 %2584
    %v2586 = vsel %vm2567, %v525, -inf
    %2587 = vmax.xlane.f32.xlu0 %v2586
    %v2588 = vpop.xlane.xlu0 %2587
    %v2589 = vsel %vm2567, %v526, -inf
    %2590 = vmax.xlane.f32.xlu0 %v2589
    %v2591 = vpop.xlane.xlu0 %2590
    %v2592 = vsel %vm2567, %v655, -inf
    %2593 = vmax.xlane.f32.xlu0 %v2592
    %v2594 = vpop.xlane.xlu0 %2593
    %v2595 = vsel %vm2567, %v656, -inf
    %2596 = vmax.xlane.f32.xlu0 %v2595
    %v2597 = vpop.xlane.xlu0 %2596
    %v2598 = vsel %vm2567, %v657, -inf
    %2599 = vmax.xlane.f32.xlu0 %v2598
    %v2600 = vpop.xlane.xlu0 %2599
    %v2601 = vsel %vm2567, %v658, -inf
    %2602 = vmax.xlane.f32.xlu0 %v2601
    %v2603 = vpop.xlane.xlu0 %2602
    %v2604 = vsel %vm2567, %v659, -inf
    %2605 = vmax.xlane.f32.xlu0 %v2604
    %v2606 = vpop.xlane.xlu0 %2605
    %v2607 = vsel %vm2567, %v660, -inf
    %2608 = vmax.xlane.f32.xlu0 %v2607
    %v2609 = vpop.xlane.xlu0 %2608
    %v2610 = vsel %vm2567, %v661, -inf
    %2611 = vmax.xlane.f32.xlu0 %v2610
    %v2612 = vpop.xlane.xlu0 %2611
    %v2613 = vsel %vm2567, %v662, -inf
    %2614 = vmax.xlane.f32.xlu0 %v2613
    %v2615 = vpop.xlane.xlu0 %2614
    %v2616 = vsel %vm2567, %v791, -inf
    %2617 = vmax.xlane.f32.xlu0 %v2616
    %v2618 = vpop.xlane.xlu0 %2617
    %v2619 = vsel %vm2567, %v792, -inf
    %2620 = vmax.xlane.f32.xlu0 %v2619
    %v2621 = vpop.xlane.xlu0 %2620
    %v2622 = vsel %vm2567, %v793, -inf
    %2623 = vmax.xlane.f32.xlu0 %v2622
    %v2624 = vpop.xlane.xlu0 %2623
    %v2625 = vsel %vm2567, %v794, -inf
    %2626 = vmax.xlane.f32.xlu0 %v2625
    %v2627 = vpop.xlane.xlu0 %2626
    %v2628 = vsel %vm2567, %v795, -inf
    %2629 = vmax.xlane.f32.xlu0 %v2628
    %v2630 = vpop.xlane.xlu0 %2629
    %v2631 = vsel %vm2567, %v796, -inf
    %2632 = vmax.xlane.f32.xlu0 %v2631
    %v2633 = vpop.xlane.xlu0 %2632
    %v2634 = vsel %vm2567, %v797, -inf
    %2635 = vmax.xlane.f32.xlu0 %v2634
    %v2636 = vpop.xlane.xlu0 %2635
    %v2637 = vsel %vm2567, %v798, -inf
    %2638 = vmax.xlane.f32.xlu0 %v2637
    %v2639 = vpop.xlane.xlu0 %2638
    %v2640 = vsel %vm2567, %v927, -inf
    %2641 = vmax.xlane.f32.xlu0 %v2640
    %v2642 = vpop.xlane.xlu0 %2641
    %v2643 = vsel %vm2567, %v928, -inf
    %2644 = vmax.xlane.f32.xlu0 %v2643
    %v2645 = vpop.xlane.xlu0 %2644
    %v2646 = vsel %vm2567, %v929, -inf
    %2647 = vmax.xlane.f32.xlu0 %v2646
    %v2648 = vpop.xlane.xlu0 %2647
    %v2649 = vsel %vm2567, %v930, -inf
    %2650 = vmax.xlane.f32.xlu0 %v2649
    %v2651 = vpop.xlane.xlu0 %2650
    %v2652 = vsel %vm2567, %v931, -inf
    %2653 = vmax.xlane.f32.xlu0 %v2652
    %v2654 = vpop.xlane.xlu0 %2653
    %v2655 = vsel %vm2567, %v932, -inf
    %2656 = vmax.xlane.f32.xlu0 %v2655
    %v2657 = vpop.xlane.xlu0 %2656
    %v2658 = vsel %vm2567, %v933, -inf
    %2659 = vmax.xlane.f32.xlu0 %v2658
    %v2660 = vpop.xlane.xlu0 %2659
    %v2661 = vsel %vm2567, %v934, -inf
    %2662 = vmax.xlane.f32.xlu0 %v2661
    %v2663 = vpop.xlane.xlu0 %2662
    %v2664 = vsel %vm2567, %v1063, -inf
    %2665 = vmax.xlane.f32.xlu0 %v2664
    %v2666 = vpop.xlane.xlu0 %2665
    %v2667 = vsel %vm2567, %v1064, -inf
    %2668 = vmax.xlane.f32.xlu0 %v2667
    %v2669 = vpop.xlane.xlu0 %2668
    %v2670 = vsel %vm2567, %v1065, -inf
    %2671 = vmax.xlane.f32.xlu0 %v2670
    %v2672 = vpop.xlane.xlu0 %2671
    %v2673 = vsel %vm2567, %v1066, -inf
    %2674 = vmax.xlane.f32.xlu0 %v2673
    %v2675 = vpop.xlane.xlu0 %2674
    %v2676 = vsel %vm2567, %v1067, -inf
    %2677 = vmax.xlane.f32.xlu0 %v2676
    %v2678 = vpop.xlane.xlu0 %2677
    %v2679 = vsel %vm2567, %v1068, -inf
    %2680 = vmax.xlane.f32.xlu0 %v2679
    %v2681 = vpop.xlane.xlu0 %2680
    %v2682 = vsel %vm2567, %v1069, -inf
    %2683 = vmax.xlane.f32.xlu0 %v2682
    %v2684 = vpop.xlane.xlu0 %2683
    %v2685 = vsel %vm2567, %v1070, -inf
    %2686 = vmax.xlane.f32.xlu0 %v2685
    %v2687 = vpop.xlane.xlu0 %2686
    %v2688 = vsel %vm2567, %v1199, -inf
    %2689 = vmax.xlane.f32.xlu0 %v2688
    %v2690 = vpop.xlane.xlu0 %2689
    %v2691 = vsel %vm2567, %v1200, -inf
    %2692 = vmax.xlane.f32.xlu0 %v2691
    %v2693 = vpop.xlane.xlu0 %2692
    %v2694 = vsel %vm2567, %v1201, -inf
    %2695 = vmax.xlane.f32.xlu0 %v2694
    %v2696 = vpop.xlane.xlu0 %2695
    %v2697 = vsel %vm2567, %v1202, -inf
    %2698 = vmax.xlane.f32.xlu0 %v2697
    %v2699 = vpop.xlane.xlu0 %2698
    %v2700 = vsel %vm2567, %v1203, -inf
    %2701 = vmax.xlane.f32.xlu0 %v2700
    %v2702 = vpop.xlane.xlu0 %2701
    %v2703 = vsel %vm2567, %v1204, -inf
    %2704 = vmax.xlane.f32.xlu0 %v2703
    %v2705 = vpop.xlane.xlu0 %2704
    %v2706 = vsel %vm2567, %v1205, -inf
    %2707 = vmax.xlane.f32.xlu0 %v2706
    %v2708 = vpop.xlane.xlu0 %2707
    %v2709 = vsel %vm2567, %v1206, -inf
    %2710 = vmax.xlane.f32.xlu0 %v2709
    %v2711 = vpop.xlane.xlu0 %2710
    %v2712 = vsel %vm2567, %v1335, -inf
    %2713 = vmax.xlane.f32.xlu0 %v2712
    %v2714 = vpop.xlane.xlu0 %2713
    %v2715 = vsel %vm2567, %v1336, -inf
    %2716 = vmax.xlane.f32.xlu0 %v2715
    %v2717 = vpop.xlane.xlu0 %2716
    %v2718 = vsel %vm2567, %v1337, -inf
    %2719 = vmax.xlane.f32.xlu0 %v2718
    %v2720 = vpop.xlane.xlu0 %2719
    %v2721 = vsel %vm2567, %v1338, -inf
    %2722 = vmax.xlane.f32.xlu0 %v2721
    %v2723 = vpop.xlane.xlu0 %2722
    %v2724 = vsel %vm2567, %v1339, -inf
    %2725 = vmax.xlane.f32.xlu0 %v2724
    %v2726 = vpop.xlane.xlu0 %2725
    %v2727 = vsel %vm2567, %v1340, -inf
    %2728 = vmax.xlane.f32.xlu0 %v2727
    %v2729 = vpop.xlane.xlu0 %2728
    %v2730 = vsel %vm2567, %v1341, -inf
    %2731 = vmax.xlane.f32.xlu0 %v2730
    %v2732 = vpop.xlane.xlu0 %2731
    %v2733 = vsel %vm2567, %v1342, -inf
    %2734 = vmax.xlane.f32.xlu0 %v2733
    %v2735 = vpop.xlane.xlu0 %2734
    %v2736 = vsel %vm2567, %v1471, -inf
    %2737 = vmax.xlane.f32.xlu0 %v2736
    %v2738 = vpop.xlane.xlu0 %2737
    %v2739 = vsel %vm2567, %v1472, -inf
    %2740 = vmax.xlane.f32.xlu0 %v2739
    %v2741 = vpop.xlane.xlu0 %2740
    %v2742 = vsel %vm2567, %v1473, -inf
    %2743 = vmax.xlane.f32.xlu0 %v2742
    %v2744 = vpop.xlane.xlu0 %2743
    %v2745 = vsel %vm2567, %v1474, -inf
    %2746 = vmax.xlane.f32.xlu0 %v2745
    %v2747 = vpop.xlane.xlu0 %2746
    %v2748 = vsel %vm2567, %v1475, -inf
    %2749 = vmax.xlane.f32.xlu0 %v2748
    %v2750 = vpop.xlane.xlu0 %2749
    %v2751 = vsel %vm2567, %v1476, -inf
    %2752 = vmax.xlane.f32.xlu0 %v2751
    %v2753 = vpop.xlane.xlu0 %2752
    %v2754 = vsel %vm2567, %v1477, -inf
    %2755 = vmax.xlane.f32.xlu0 %v2754
    %v2756 = vpop.xlane.xlu0 %2755
    %v2757 = vsel %vm2567, %v1478, -inf
    %2758 = vmax.xlane.f32.xlu0 %v2757
    %v2759 = vpop.xlane.xlu0 %2758
    %v2760 = vsel %vm2567, %v1607, -inf
    %2761 = vmax.xlane.f32.xlu0 %v2760
    %v2762 = vpop.xlane.xlu0 %2761
    %v2763 = vsel %vm2567, %v1608, -inf
    %2764 = vmax.xlane.f32.xlu0 %v2763
    %v2765 = vpop.xlane.xlu0 %2764
    %v2766 = vsel %vm2567, %v1609, -inf
    %2767 = vmax.xlane.f32.xlu0 %v2766
    %v2768 = vpop.xlane.xlu0 %2767
    %v2769 = vsel %vm2567, %v1610, -inf
    %2770 = vmax.xlane.f32.xlu0 %v2769
    %v2771 = vpop.xlane.xlu0 %2770
    %v2772 = vsel %vm2567, %v1611, -inf
    %2773 = vmax.xlane.f32.xlu0 %v2772
    %v2774 = vpop.xlane.xlu0 %2773
    %v2775 = vsel %vm2567, %v1612, -inf
    %2776 = vmax.xlane.f32.xlu0 %v2775
    %v2777 = vpop.xlane.xlu0 %2776
    %v2778 = vsel %vm2567, %v1613, -inf
    %2779 = vmax.xlane.f32.xlu0 %v2778
    %v2780 = vpop.xlane.xlu0 %2779
    %v2781 = vsel %vm2567, %v1614, -inf
    %2782 = vmax.xlane.f32.xlu0 %v2781
    %v2783 = vpop.xlane.xlu0 %2782
    %v2784 = vsel %vm2567, %v1743, -inf
    %2785 = vmax.xlane.f32.xlu0 %v2784
    %v2786 = vpop.xlane.xlu0 %2785
    %v2787 = vsel %vm2567, %v1744, -inf
    %2788 = vmax.xlane.f32.xlu0 %v2787
    %v2789 = vpop.xlane.xlu0 %2788
    %v2790 = vsel %vm2567, %v1745, -inf
    %2791 = vmax.xlane.f32.xlu0 %v2790
    %v2792 = vpop.xlane.xlu0 %2791
    %v2793 = vsel %vm2567, %v1746, -inf
    %2794 = vmax.xlane.f32.xlu0 %v2793
    %v2795 = vpop.xlane.xlu0 %2794
    %v2796 = vsel %vm2567, %v1747, -inf
    %2797 = vmax.xlane.f32.xlu0 %v2796
    %v2798 = vpop.xlane.xlu0 %2797
    %v2799 = vsel %vm2567, %v1748, -inf
    %2800 = vmax.xlane.f32.xlu0 %v2799
    %v2801 = vpop.xlane.xlu0 %2800
    %v2802 = vsel %vm2567, %v1749, -inf
    %2803 = vmax.xlane.f32.xlu0 %v2802
    %v2804 = vpop.xlane.xlu0 %2803
    %v2805 = vsel %vm2567, %v1750, -inf
    %2806 = vmax.xlane.f32.xlu0 %v2805
    %v2807 = vpop.xlane.xlu0 %2806
    %v2808 = vsel %vm2567, %v1879, -inf
    %2809 = vmax.xlane.f32.xlu0 %v2808
    %v2810 = vpop.xlane.xlu0 %2809
    %v2811 = vsel %vm2567, %v1880, -inf
    %2812 = vmax.xlane.f32.xlu0 %v2811
    %v2813 = vpop.xlane.xlu0 %2812
    %v2814 = vsel %vm2567, %v1881, -inf
    %2815 = vmax.xlane.f32.xlu0 %v2814
    %v2816 = vpop.xlane.xlu0 %2815
    %v2817 = vsel %vm2567, %v1882, -inf
    %2818 = vmax.xlane.f32.xlu0 %v2817
    %v2819 = vpop.xlane.xlu0 %2818
    %v2820 = vsel %vm2567, %v1883, -inf
    %2821 = vmax.xlane.f32.xlu0 %v2820
    %v2822 = vpop.xlane.xlu0 %2821
    %v2823 = vsel %vm2567, %v1884, -inf
    %2824 = vmax.xlane.f32.xlu0 %v2823
    %v2825 = vpop.xlane.xlu0 %2824
    %v2826 = vsel %vm2567, %v1885, -inf
    %2827 = vmax.xlane.f32.xlu0 %v2826
    %v2828 = vpop.xlane.xlu0 %2827
    %v2829 = vsel %vm2567, %v1886, -inf
    %2830 = vmax.xlane.f32.xlu0 %v2829
    %v2831 = vpop.xlane.xlu0 %2830
    %v2832 = vsel %vm2567, %v2015, -inf
    %2833 = vmax.xlane.f32.xlu0 %v2832
    %v2834 = vpop.xlane.xlu0 %2833
    %v2835 = vsel %vm2567, %v2016, -inf
    %2836 = vmax.xlane.f32.xlu0 %v2835
    %v2837 = vpop.xlane.xlu0 %2836
    %v2838 = vsel %vm2567, %v2017, -inf
    %2839 = vmax.xlane.f32.xlu0 %v2838
    %v2840 = vpop.xlane.xlu0 %2839
    %v2841 = vsel %vm2567, %v2018, -inf
    %2842 = vmax.xlane.f32.xlu0 %v2841
    %v2843 = vpop.xlane.xlu0 %2842
    %v2844 = vsel %vm2567, %v2019, -inf
    %2845 = vmax.xlane.f32.xlu0 %v2844
    %v2846 = vpop.xlane.xlu0 %2845
    %v2847 = vsel %vm2567, %v2020, -inf
    %2848 = vmax.xlane.f32.xlu0 %v2847
    %v2849 = vpop.xlane.xlu0 %2848
    %v2850 = vsel %vm2567, %v2021, -inf
    %2851 = vmax.xlane.f32.xlu0 %v2850
    %v2852 = vpop.xlane.xlu0 %2851
    %v2853 = vsel %vm2567, %v2022, -inf
    %2854 = vmax.xlane.f32.xlu0 %v2853
    %v2855 = vpop.xlane.xlu0 %2854
    %v2856 = vsel %vm2567, %v2151, -inf
    %2857 = vmax.xlane.f32.xlu0 %v2856
    %v2858 = vpop.xlane.xlu0 %2857
    %v2859 = vsel %vm2567, %v2152, -inf
    %2860 = vmax.xlane.f32.xlu0 %v2859
    %v2861 = vpop.xlane.xlu0 %2860
    %v2862 = vsel %vm2567, %v2153, -inf
    %2863 = vmax.xlane.f32.xlu0 %v2862
    %v2864 = vpop.xlane.xlu0 %2863
    %v2865 = vsel %vm2567, %v2154, -inf
    %2866 = vmax.xlane.f32.xlu0 %v2865
    %v2867 = vpop.xlane.xlu0 %2866
    %v2868 = vsel %vm2567, %v2155, -inf
    %2869 = vmax.xlane.f32.xlu0 %v2868
    %v2870 = vpop.xlane.xlu0 %2869
    %v2871 = vsel %vm2567, %v2156, -inf
    %2872 = vmax.xlane.f32.xlu0 %v2871
    %v2873 = vpop.xlane.xlu0 %2872
    %v2874 = vsel %vm2567, %v2157, -inf
    %2875 = vmax.xlane.f32.xlu0 %v2874
    %v2876 = vpop.xlane.xlu0 %2875
    %v2877 = vsel %vm2567, %v2158, -inf
    %2878 = vmax.xlane.f32.xlu0 %v2877
    %v2879 = vpop.xlane.xlu0 %2878
    %v2880 = vsel %vm2567, %v2287, -inf
    %2881 = vmax.xlane.f32.xlu0 %v2880
    %v2882 = vpop.xlane.xlu0 %2881
    %v2883 = vsel %vm2567, %v2288, -inf
    %2884 = vmax.xlane.f32.xlu0 %v2883
    %v2885 = vpop.xlane.xlu0 %2884
    %v2886 = vsel %vm2567, %v2289, -inf
    %2887 = vmax.xlane.f32.xlu0 %v2886
    %v2888 = vpop.xlane.xlu0 %2887
    %v2889 = vsel %vm2567, %v2290, -inf
    %2890 = vmax.xlane.f32.xlu0 %v2889
    %v2891 = vpop.xlane.xlu0 %2890
    %v2892 = vsel %vm2567, %v2291, -inf
    %2893 = vmax.xlane.f32.xlu0 %v2892
    %v2894 = vpop.xlane.xlu0 %2893
    %v2895 = vsel %vm2567, %v2292, -inf
    %2896 = vmax.xlane.f32.xlu0 %v2895
    %v2897 = vpop.xlane.xlu0 %2896
    %v2898 = vsel %vm2567, %v2293, -inf
    %2899 = vmax.xlane.f32.xlu0 %v2898
    %v2900 = vpop.xlane.xlu0 %2899
    %v2901 = vsel %vm2567, %v2294, -inf
    %2902 = vmax.xlane.f32.xlu0 %v2901
    %v2903 = vpop.xlane.xlu0 %2902
    %v2904 = vsel %vm2567, %v2423, -inf
    %2905 = vmax.xlane.f32.xlu0 %v2904
    %v2906 = vpop.xlane.xlu0 %2905
    %v2907 = vsel %vm2567, %v2424, -inf
    %2908 = vmax.xlane.f32.xlu0 %v2907
    %v2909 = vpop.xlane.xlu0 %2908
    %v2910 = vsel %vm2567, %v2425, -inf
    %2911 = vmax.xlane.f32.xlu0 %v2910
    %v2912 = vpop.xlane.xlu0 %2911
    %v2913 = vsel %vm2567, %v2426, -inf
    %2914 = vmax.xlane.f32.xlu0 %v2913
    %v2915 = vpop.xlane.xlu0 %2914
    %v2916 = vsel %vm2567, %v2427, -inf
    %2917 = vmax.xlane.f32.xlu0 %v2916
    %v2918 = vpop.xlane.xlu0 %2917
    %v2919 = vsel %vm2567, %v2428, -inf
    %2920 = vmax.xlane.f32.xlu0 %v2919
    %v2921 = vpop.xlane.xlu0 %2920
    %v2922 = vsel %vm2567, %v2429, -inf
    %2923 = vmax.xlane.f32.xlu0 %v2922
    %v2924 = vpop.xlane.xlu0 %2923
    %v2925 = vsel %vm2567, %v2430, -inf
    %2926 = vmax.xlane.f32.xlu0 %v2925
    %v2927 = vpop.xlane.xlu0 %2926
    %v2928 = vsel %vm2567, %v2559, -inf
    %2929 = vmax.xlane.f32.xlu0 %v2928
    %v2930 = vpop.xlane.xlu0 %2929
    %v2931 = vsel %vm2567, %v2560, -inf
    %2932 = vmax.xlane.f32.xlu0 %v2931
    %v2933 = vpop.xlane.xlu0 %2932
    %v2934 = vsel %vm2567, %v2561, -inf
    %2935 = vmax.xlane.f32.xlu0 %v2934
    %v2936 = vpop.xlane.xlu0 %2935
    %v2937 = vsel %vm2567, %v2562, -inf
    %2938 = vmax.xlane.f32.xlu0 %v2937
    %v2939 = vpop.xlane.xlu0 %2938
    %v2940 = vsel %vm2567, %v2563, -inf
    %2941 = vmax.xlane.f32.xlu0 %v2940
    %v2942 = vpop.xlane.xlu0 %2941
    %v2943 = vsel %vm2567, %v2564, -inf
    %2944 = vmax.xlane.f32.xlu0 %v2943
    %v2945 = vpop.xlane.xlu0 %2944
    %v2946 = vsel %vm2567, %v2565, -inf
    %2947 = vmax.xlane.f32.xlu0 %v2946
    %v2948 = vpop.xlane.xlu0 %2947
    %v2949 = vsel %vm2567, %v2566, -inf
    %2950 = vmax.xlane.f32.xlu0 %v2949
    %v2951 = vpop.xlane.xlu0 %2950
    %v2952 = vmax.f32 %v2570, %v2573
    %v2953 = vmax.f32 %v2576, %v2579
    %v2954 = vmax.f32 %v2582, %v2585
    %v2955 = vmax.f32 %v2588, %v2591
    %v2956 = vmax.f32 %v2594, %v2597
    %v2957 = vmax.f32 %v2600, %v2603
    %v2958 = vmax.f32 %v2606, %v2609
    %v2959 = vmax.f32 %v2612, %v2615
    %v2960 = vmax.f32 %v2618, %v2621
    %v2961 = vmax.f32 %v2624, %v2627
    %v2962 = vmax.f32 %v2630, %v2633
    %v2963 = vmax.f32 %v2636, %v2639
    %v2964 = vmax.f32 %v2642, %v2645
    %v2965 = vmax.f32 %v2648, %v2651
    %v2966 = vmax.f32 %v2654, %v2657
    %v2967 = vmax.f32 %v2660, %v2663
    %v2968 = vmax.f32 %v2666, %v2669
    %v2969 = vmax.f32 %v2672, %v2675
    %v2970 = vmax.f32 %v2678, %v2681
    %v2971 = vmax.f32 %v2684, %v2687
    %v2972 = vmax.f32 %v2690, %v2693
    %v2973 = vmax.f32 %v2696, %v2699
    %v2974 = vmax.f32 %v2702, %v2705
    %v2975 = vmax.f32 %v2708, %v2711
    %v2976 = vmax.f32 %v2714, %v2717
    %v2977 = vmax.f32 %v2720, %v2723
    %v2978 = vmax.f32 %v2726, %v2729
    %v2979 = vmax.f32 %v2732, %v2735
    %v2980 = vmax.f32 %v2738, %v2741
    %v2981 = vmax.f32 %v2744, %v2747
    %v2982 = vmax.f32 %v2750, %v2753
    %v2983 = vmax.f32 %v2756, %v2759
    %v2984 = vmax.f32 %v2762, %v2765
    %v2985 = vmax.f32 %v2768, %v2771
    %v2986 = vmax.f32 %v2774, %v2777
    %v2987 = vmax.f32 %v2780, %v2783
    %v2988 = vmax.f32 %v2786, %v2789
    %v2989 = vmax.f32 %v2792, %v2795
    %v2990 = vmax.f32 %v2798, %v2801
    %v2991 = vmax.f32 %v2804, %v2807
    %v2992 = vmax.f32 %v2810, %v2813
    %v2993 = vmax.f32 %v2816, %v2819
    %v2994 = vmax.f32 %v2822, %v2825
    %v2995 = vmax.f32 %v2828, %v2831
    %v2996 = vmax.f32 %v2834, %v2837
    %v2997 = vmax.f32 %v2840, %v2843
    %v2998 = vmax.f32 %v2846, %v2849
    %v2999 = vmax.f32 %v2852, %v2855
    %v3000 = vmax.f32 %v2858, %v2861
    %v3001 = vmax.f32 %v2864, %v2867
    %v3002 = vmax.f32 %v2870, %v2873
    %v3003 = vmax.f32 %v2876, %v2879
    %v3004 = vmax.f32 %v2882, %v2885
    %v3005 = vmax.f32 %v2888, %v2891
    %v3006 = vmax.f32 %v2894, %v2897
    %v3007 = vmax.f32 %v2900, %v2903
    %v3008 = vmax.f32 %v2906, %v2909
    %v3009 = vmax.f32 %v2912, %v2915
    %v3010 = vmax.f32 %v2918, %v2921
    %v3011 = vmax.f32 %v2924, %v2927
    %v3012 = vmax.f32 %v2930, %v2933
    %v3013 = vmax.f32 %v2936, %v2939
    %v3014 = vmax.f32 %v2942, %v2945
    %v3015 = vmax.f32 %v2948, %v2951
    %v3080 = vlaneseq
    %v3081 = vand.u32 %v3080, 127
    %v3082 = vlaneseq
    %v3083 = vshrl.u32 %v3082, 7
    %v3084 = vsub.s32 %v3081, %v3083
    %v3085 = vrot.slane %v2952, %v3084
    %v3086 = vlaneseq
    %v3087 = vshrl.u32 %v3086, 7
    %v3088 = vsub.s32 %v3081, %v3087
    %v3089 = vrot.slane %v2953, %v3088
    %v3090 = vlaneseq
    %v3091 = vshrl.u32 %v3090, 7
    %v3092 = vsub.s32 %v3081, %v3091
    %v3093 = vrot.slane %v2954, %v3092
    %v3094 = vlaneseq
    %v3095 = vshrl.u32 %v3094, 7
    %v3096 = vsub.s32 %v3081, %v3095
    %v3097 = vrot.slane %v2955, %v3096
    %v3098 = vlaneseq
    %v3099 = vshrl.u32 %v3098, 7
    %v3100 = vsub.s32 %v3081, %v3099
    %v3101 = vrot.slane %v2956, %v3100
    %v3102 = vlaneseq
    %v3103 = vshrl.u32 %v3102, 7
    %v3104 = vsub.s32 %v3081, %v3103
    %v3105 = vrot.slane %v2957, %v3104
    %v3106 = vlaneseq
    %v3107 = vshrl.u32 %v3106, 7
    %v3108 = vsub.s32 %v3081, %v3107
    %v3109 = vrot.slane %v2958, %v3108
    %v3110 = vlaneseq
    %v3111 = vshrl.u32 %v3110, 7
    %v3112 = vsub.s32 %v3081, %v3111
    %v3113 = vrot.slane %v2959, %v3112
    %v3114 = vlaneseq
    %v3115 = vshrl.u32 %v3114, 7
    %v3116 = vsub.s32 %v3081, %v3115
    %v3117 = vrot.slane %v2960, %v3116
    %v3118 = vlaneseq
    %v3119 = vshrl.u32 %v3118, 7
    %v3120 = vsub.s32 %v3081, %v3119
    %v3121 = vrot.slane %v2961, %v3120
    %v3122 = vlaneseq
    %v3123 = vshrl.u32 %v3122, 7
    %v3124 = vsub.s32 %v3081, %v3123
    %v3125 = vrot.slane %v2962, %v3124
    %v3126 = vlaneseq
    %v3127 = vshrl.u32 %v3126, 7
    %v3128 = vsub.s32 %v3081, %v3127
    %v3129 = vrot.slane %v2963, %v3128
    %v3130 = vlaneseq
    %v3131 = vshrl.u32 %v3130, 7
    %v3132 = vsub.s32 %v3081, %v3131
    %v3133 = vrot.slane %v2964, %v3132
    %v3134 = vlaneseq
    %v3135 = vshrl.u32 %v3134, 7
    %v3136 = vsub.s32 %v3081, %v3135
    %v3137 = vrot.slane %v2965, %v3136
    %v3138 = vlaneseq
    %v3139 = vshrl.u32 %v3138, 7
    %v3140 = vsub.s32 %v3081, %v3139
    %v3141 = vrot.slane %v2966, %v3140
    %v3142 = vlaneseq
    %v3143 = vshrl.u32 %v3142, 7
    %v3144 = vsub.s32 %v3081, %v3143
    %v3145 = vrot.slane %v2967, %v3144
    %v3146 = vlaneseq
    %v3147 = vshrl.u32 %v3146, 7
    %v3148 = vsub.s32 %v3081, %v3147
    %v3149 = vrot.slane %v2968, %v3148
    %v3150 = vlaneseq
    %v3151 = vshrl.u32 %v3150, 7
    %v3152 = vsub.s32 %v3081, %v3151
    %v3153 = vrot.slane %v2969, %v3152
    %v3154 = vlaneseq
    %v3155 = vshrl.u32 %v3154, 7
    %v3156 = vsub.s32 %v3081, %v3155
    %v3157 = vrot.slane %v2970, %v3156
    %v3158 = vlaneseq
    %v3159 = vshrl.u32 %v3158, 7
    %v3160 = vsub.s32 %v3081, %v3159
    %v3161 = vrot.slane %v2971, %v3160
    %v3162 = vlaneseq
    %v3163 = vshrl.u32 %v3162, 7
    %v3164 = vsub.s32 %v3081, %v3163
    %v3165 = vrot.slane %v2972, %v3164
    %v3166 = vlaneseq
    %v3167 = vshrl.u32 %v3166, 7
    %v3168 = vsub.s32 %v3081, %v3167
    %v3169 = vrot.slane %v2973, %v3168
    %v3170 = vlaneseq
    %v3171 = vshrl.u32 %v3170, 7
    %v3172 = vsub.s32 %v3081, %v3171
    %v3173 = vrot.slane %v2974, %v3172
    %v3174 = vlaneseq
    %v3175 = vshrl.u32 %v3174, 7
    %v3176 = vsub.s32 %v3081, %v3175
    %v3177 = vrot.slane %v2975, %v3176
    %v3178 = vlaneseq
    %v3179 = vshrl.u32 %v3178, 7
    %v3180 = vsub.s32 %v3081, %v3179
    %v3181 = vrot.slane %v2976, %v3180
    %v3182 = vlaneseq
    %v3183 = vshrl.u32 %v3182, 7
    %v3184 = vsub.s32 %v3081, %v3183
    %v3185 = vrot.slane %v2977, %v3184
    %v3186 = vlaneseq
    %v3187 = vshrl.u32 %v3186, 7
    %v3188 = vsub.s32 %v3081, %v3187
    %v3189 = vrot.slane %v2978, %v3188
    %v3190 = vlaneseq
    %v3191 = vshrl.u32 %v3190, 7
    %v3192 = vsub.s32 %v3081, %v3191
    %v3193 = vrot.slane %v2979, %v3192
    %v3194 = vlaneseq
    %v3195 = vshrl.u32 %v3194, 7
    %v3196 = vsub.s32 %v3081, %v3195
    %v3197 = vrot.slane %v2980, %v3196
    %v3198 = vlaneseq
    %v3199 = vshrl.u32 %v3198, 7
    %v3200 = vsub.s32 %v3081, %v3199
    %v3201 = vrot.slane %v2981, %v3200
    %v3202 = vlaneseq
    %v3203 = vshrl.u32 %v3202, 7
    %v3204 = vsub.s32 %v3081, %v3203
    %v3205 = vrot.slane %v2982, %v3204
    %v3206 = vlaneseq
    %v3207 = vshrl.u32 %v3206, 7
    %v3208 = vsub.s32 %v3081, %v3207
    %v3209 = vrot.slane %v2983, %v3208
    %v3210 = vlaneseq
    %v3211 = vshrl.u32 %v3210, 7
    %v3212 = vsub.s32 %v3081, %v3211
    %v3213 = vrot.slane %v2984, %v3212
    %v3214 = vlaneseq
    %v3215 = vshrl.u32 %v3214, 7
    %v3216 = vsub.s32 %v3081, %v3215
    %v3217 = vrot.slane %v2985, %v3216
    %v3218 = vlaneseq
    %v3219 = vshrl.u32 %v3218, 7
    %v3220 = vsub.s32 %v3081, %v3219
    %v3221 = vrot.slane %v2986, %v3220
    %v3222 = vlaneseq
    %v3223 = vshrl.u32 %v3222, 7
    %v3224 = vsub.s32 %v3081, %v3223
    %v3225 = vrot.slane %v2987, %v3224
    %v3226 = vlaneseq
    %v3227 = vshrl.u32 %v3226, 7
    %v3228 = vsub.s32 %v3081, %v3227
    %v3229 = vrot.slane %v2988, %v3228
    %v3230 = vlaneseq
    %v3231 = vshrl.u32 %v3230, 7
    %v3232 = vsub.s32 %v3081, %v3231
    %v3233 = vrot.slane %v2989, %v3232
    %v3234 = vlaneseq
    %v3235 = vshrl.u32 %v3234, 7
    %v3236 = vsub.s32 %v3081, %v3235
    %v3237 = vrot.slane %v2990, %v3236
    %v3238 = vlaneseq
    %v3239 = vshrl.u32 %v3238, 7
    %v3240 = vsub.s32 %v3081, %v3239
    %v3241 = vrot.slane %v2991, %v3240
    %v3242 = vlaneseq
    %v3243 = vshrl.u32 %v3242, 7
    %v3244 = vsub.s32 %v3081, %v3243
    %v3245 = vrot.slane %v2992, %v3244
    %v3246 = vlaneseq
    %v3247 = vshrl.u32 %v3246, 7
    %v3248 = vsub.s32 %v3081, %v3247
    %v3249 = vrot.slane %v2993, %v3248
    %v3250 = vlaneseq
    %v3251 = vshrl.u32 %v3250, 7
    %v3252 = vsub.s32 %v3081, %v3251
    %v3253 = vrot.slane %v2994, %v3252
    %v3254 = vlaneseq
    %v3255 = vshrl.u32 %v3254, 7
    %v3256 = vsub.s32 %v3081, %v3255
    %v3257 = vrot.slane %v2995, %v3256
    %v3258 = vlaneseq
    %v3259 = vshrl.u32 %v3258, 7
    %v3260 = vsub.s32 %v3081, %v3259
    %v3261 = vrot.slane %v2996, %v3260
    %v3262 = vlaneseq
    %v3263 = vshrl.u32 %v3262, 7
    %v3264 = vsub.s32 %v3081, %v3263
    %v3265 = vrot.slane %v2997, %v3264
    %v3266 = vlaneseq
    %v3267 = vshrl.u32 %v3266, 7
    %v3268 = vsub.s32 %v3081, %v3267
    %v3269 = vrot.slane %v2998, %v3268
    %v3270 = vlaneseq
    %v3271 = vshrl.u32 %v3270, 7
    %v3272 = vsub.s32 %v3081, %v3271
    %v3273 = vrot.slane %v2999, %v3272
    %v3274 = vlaneseq
    %v3275 = vshrl.u32 %v3274, 7
    %v3276 = vsub.s32 %v3081, %v3275
    %v3277 = vrot.slane %v3000, %v3276
    %v3278 = vlaneseq
    %v3279 = vshrl.u32 %v3278, 7
    %v3280 = vsub.s32 %v3081, %v3279
    %v3281 = vrot.slane %v3001, %v3280
    %v3282 = vlaneseq
    %v3283 = vshrl.u32 %v3282, 7
    %v3284 = vsub.s32 %v3081, %v3283
    %v3285 = vrot.slane %v3002, %v3284
    %v3286 = vlaneseq
    %v3287 = vshrl.u32 %v3286, 7
    %v3288 = vsub.s32 %v3081, %v3287
    %v3289 = vrot.slane %v3003, %v3288
    %v3290 = vlaneseq
    %v3291 = vshrl.u32 %v3290, 7
    %v3292 = vsub.s32 %v3081, %v3291
    %v3293 = vrot.slane %v3004, %v3292
    %v3294 = vlaneseq
    %v3295 = vshrl.u32 %v3294, 7
    %v3296 = vsub.s32 %v3081, %v3295
    %v3297 = vrot.slane %v3005, %v3296
    %v3298 = vlaneseq
    %v3299 = vshrl.u32 %v3298, 7
    %v3300 = vsub.s32 %v3081, %v3299
    %v3301 = vrot.slane %v3006, %v3300
    %v3302 = vlaneseq
    %v3303 = vshrl.u32 %v3302, 7
    %v3304 = vsub.s32 %v3081, %v3303
    %v3305 = vrot.slane %v3007, %v3304
    %v3306 = vlaneseq
    %v3307 = vshrl.u32 %v3306, 7
    %v3308 = vsub.s32 %v3081, %v3307
    %v3309 = vrot.slane %v3008, %v3308
    %v3310 = vlaneseq
    %v3311 = vshrl.u32 %v3310, 7
    %v3312 = vsub.s32 %v3081, %v3311
    %v3313 = vrot.slane %v3009, %v3312
    %v3314 = vlaneseq
    %v3315 = vshrl.u32 %v3314, 7
    %v3316 = vsub.s32 %v3081, %v3315
    %v3317 = vrot.slane %v3010, %v3316
    %v3318 = vlaneseq
    %v3319 = vshrl.u32 %v3318, 7
    %v3320 = vsub.s32 %v3081, %v3319
    %v3321 = vrot.slane %v3011, %v3320
    %v3322 = vlaneseq
    %v3323 = vshrl.u32 %v3322, 7
    %v3324 = vsub.s32 %v3081, %v3323
    %v3325 = vrot.slane %v3012, %v3324
    %v3326 = vlaneseq
    %v3327 = vshrl.u32 %v3326, 7
    %v3328 = vsub.s32 %v3081, %v3327
    %v3329 = vrot.slane %v3013, %v3328
    %v3330 = vlaneseq
    %v3331 = vshrl.u32 %v3330, 7
    %v3332 = vsub.s32 %v3081, %v3331
    %v3333 = vrot.slane %v3014, %v3332
    %v3334 = vlaneseq
    %v3335 = vshrl.u32 %v3334, 7
    %v3336 = vsub.s32 %v3081, %v3335
    %v3337 = vrot.slane %v3015, %v3336
    %vm3338 = vcmask 1041409
    %v3339 = vsel %vm3338, %v3089, %v3085
    %vm3340 = vcmask 1042434
    %v3341 = vsel %vm3340, %v3093, %v3339
    %vm3342 = vcmask 1043459
    %v3343 = vsel %vm3342, %v3097, %v3341
    %vm3344 = vcmask 1044484
    %v3345 = vsel %vm3344, %v3101, %v3343
    %vm3346 = vcmask 1045509
    %v3347 = vsel %vm3346, %v3105, %v3345
    %vm3348 = vcmask 1046534
    %v3349 = vsel %vm3348, %v3109, %v3347
    %vm3350 = vcmask 1047559
    %v3351 = vsel %vm3350, %v3113, %v3349
    %v3352 = vsel %vm3338, %v3121, %v3117
    %v3353 = vsel %vm3340, %v3125, %v3352
    %v3354 = vsel %vm3342, %v3129, %v3353
    %v3355 = vsel %vm3344, %v3133, %v3354
    %v3356 = vsel %vm3346, %v3137, %v3355
    %v3357 = vsel %vm3348, %v3141, %v3356
    %v3358 = vsel %vm3350, %v3145, %v3357
    %v3359 = vsel %vm3338, %v3153, %v3149
    %v3360 = vsel %vm3340, %v3157, %v3359
    %v3361 = vsel %vm3342, %v3161, %v3360
    %v3362 = vsel %vm3344, %v3165, %v3361
    %v3363 = vsel %vm3346, %v3169, %v3362
    %v3364 = vsel %vm3348, %v3173, %v3363
    %v3365 = vsel %vm3350, %v3177, %v3364
    %v3366 = vsel %vm3338, %v3185, %v3181
    %v3367 = vsel %vm3340, %v3189, %v3366
    %v3368 = vsel %vm3342, %v3193, %v3367
    %v3369 = vsel %vm3344, %v3197, %v3368
    %v3370 = vsel %vm3346, %v3201, %v3369
    %v3371 = vsel %vm3348, %v3205, %v3370
    %v3372 = vsel %vm3350, %v3209, %v3371
    %v3373 = vsel %vm3338, %v3217, %v3213
    %v3374 = vsel %vm3340, %v3221, %v3373
    %v3375 = vsel %vm3342, %v3225, %v3374
    %v3376 = vsel %vm3344, %v3229, %v3375
    %v3377 = vsel %vm3346, %v3233, %v3376
    %v3378 = vsel %vm3348, %v3237, %v3377
    %v3379 = vsel %vm3350, %v3241, %v3378
    %v3380 = vsel %vm3338, %v3249, %v3245
    %v3381 = vsel %vm3340, %v3253, %v3380
    %v3382 = vsel %vm3342, %v3257, %v3381
    %v3383 = vsel %vm3344, %v3261, %v3382
    %v3384 = vsel %vm3346, %v3265, %v3383
    %v3385 = vsel %vm3348, %v3269, %v3384
    %v3386 = vsel %vm3350, %v3273, %v3385
    %v3387 = vsel %vm3338, %v3281, %v3277
    %v3388 = vsel %vm3340, %v3285, %v3387
    %v3389 = vsel %vm3342, %v3289, %v3388
    %v3390 = vsel %vm3344, %v3293, %v3389
    %v3391 = vsel %vm3346, %v3297, %v3390
    %v3392 = vsel %vm3348, %v3301, %v3391
    %v3393 = vsel %vm3350, %v3305, %v3392
    %v3394 = vsel %vm3338, %v3313, %v3309
    %v3395 = vsel %vm3340, %v3317, %v3394
    %v3396 = vsel %vm3342, %v3321, %v3395
    %v3397 = vsel %vm3344, %v3325, %v3396
    %v3398 = vsel %vm3346, %v3329, %v3397
    %v3399 = vsel %vm3348, %v3333, %v3398
    %v3400 = vsel %vm3350, %v3337, %v3399
    %vm3409 = vcmask 64512
    %3410 = vst.msk [vmem:[#allocation5] sm:$0xff] %vm3409, %v3351
    %3411 = vst.msk [vmem:[#allocation5 + $0x8] sm:$0xff] %vm3409, %v3358
    %3412 = vst.msk [vmem:[#allocation5 + $0x10] sm:$0xff] %vm3409, %v3365
    %3413 = vst.msk [vmem:[#allocation5 + $0x18] sm:$0xff] %vm3409, %v3372
    %3414 = vst.msk [vmem:[#allocation5 + $0x20] sm:$0xff] %vm3409, %v3379
    %3415 = vst.msk [vmem:[#allocation5 + $0x28] sm:$0xff] %vm3409, %v3386
    %3416 = vst.msk [vmem:[#allocation5 + $0x30] sm:$0xff] %vm3409, %v3393
    %3417 = vst.msk [vmem:[#allocation5 + $0x38] sm:$0xff] %vm3409, %v3400
    // Predicated region
    $region10: #{tpu_custom_call.1} parent=1 // pred_check
      _
    $region11: #{tpu_custom_call.1} parent=1 // pred_check_branch
      %3419 = sbr.rel (0) target = $region13
    $region12: #{tpu_custom_call.1} parent=1 // pred_region
      %s3421 = ssub.s32 1024, 1024
      %3422 = vsyncadd [#allocation4], %s3421
      %s3423 = sshll.u32 [#allocation5], 4
      %s3424 = int_to_ptr.vmem [resolvable:$true] %s3423
      %3429 = dma.vmem_to_hbm [thread:$0]  %s3424, 1024, %s1, [#allocation4], 128, 128, 8
    $region13: #{tpu_custom_call.1} parent=1 // pred_fallthru
      _
    // Predicated region
    $region14: #{tpu_custom_call.1} parent=1 // pred_check
      _
    $region15: #{tpu_custom_call.1} parent=1 // pred_check_branch
      %3431 = sbr.rel (0) target = $region17
    $region16: #{tpu_custom_call.1} parent=1 // pred_region
      %3432 = dma.done [#allocation4], 1024
    $region17: #{tpu_custom_call.1} parent=1 // pred_fallthru
      _
    %3433 = vsyncpa [#allocation3], 1
    %3434 = vsyncpa [#allocation4], 1

</llo_original>
